<compile_context>
chip_gen: v7x
topology: tpu7x:2x2x1
jax: 0.10.0
libtpu: 0.0.40
codegen_flags: <defaults>
</compile_context>

<pallas_src>
import functools

import jax
import jax.numpy as jnp
from jax.experimental import pallas as pl
from jax.experimental.pallas import tpu as pltpu

BN_EPS = 1e-5
LEAKY_SLOPE = 0.1


# ----------------------------- Pallas kernel --------------------------------
def _up_transition_kernel(x2_ref, x1_ref, w1_ref, s1_ref, b1_ref,
                          w2_ref, s2_ref, b2_ref, mask_ref, o_ref, p_ref,
                          *, taps, hw):
    """One batch element per grid step.  Everything is (channels, H*W) layout.

    x2_ref : (1, C2, HW)  f32    skip connection (already flattened spatially)
    x1_ref : (1, C1, HW)  f32    bilinearly upsampled lower-resolution feature map
    w1_ref : (Cmid, 9*Cin) bf16  conv1 weights, K index = (ky*3+kx)*Cin + cin
    s1_ref, b1_ref : (Cmid, 1) f32   folded conv-bias + BN scale / bias
    w2_ref : (Cout, 9*Cmid) bf16
    s2_ref, b2_ref : (Cout, 1) f32
    mask_ref : (9, HW) f32 {0,1}     per-tap halo masks (zero where the 3x3 tap
                                     falls outside the image)
    o_ref  : (1, Cout, HW) f32
    p_ref  : (9*Cin, HW) bf16  VMEM scratch holding the im2col patches (reused
                               by both convs since Cmid == Cin for this module)
    """
    masks = mask_ref[...]                                   # (9, HW) f32

    def im2col(act):
        # act: (C, HW) f32.  Write masked lane-shifted copies (tap-major,
        # channel-minor) into the bf16 patches scratch.  Lane positions that
        # wrap around the H*W axis are always killed by the halo mask, so the
        # aligned self-concat "double-wide" trick is safe.
        c = act.shape[0]
        wide = jnp.concatenate([act, act], axis=1)          # (C, 2*HW), aligned
        for t, s in enumerate(taps):
            sp = s % hw                                     # static python int
            shifted = wide[:, sp:sp + hw] * masks[t:t + 1, :]
            p_ref[t * c:(t + 1) * c, :] = shifted.astype(jnp.bfloat16)

    # ---- ConvBlock 1: 3x3 conv as a single K=9*Cin MXU matmul + BN + LeakyReLU
    a = jnp.concatenate([x2_ref[0], x1_ref[0]], axis=0)     # (Cin, HW), f32
    im2col(a)
    h1 = jnp.dot(w1_ref[...], p_ref[...],
                 preferred_element_type=jnp.float32)        # (Cmid, HW) f32
    h1 = h1 * s1_ref[...] + b1_ref[...]
    h1 = jnp.where(h1 > 0, h1, LEAKY_SLOPE * h1)

    # ---- ConvBlock 2
    im2col(h1)
    h2 = jnp.dot(w2_ref[...], p_ref[...],
                 preferred_element_type=jnp.float32)        # (Cout, HW) f32
    h2 = h2 * s2_ref[...] + b2_ref[...]
    h2 = jnp.where(h2 > 0, h2, LEAKY_SLOPE * h2)
    o_ref[0] = h2


# ------------------------------ JAX glue -------------------------------------
def _interp_axis(in_size, out_size):
    """PyTorch F.interpolate(bilinear, align_corners=False) index/weight math."""
    scale = in_size / out_size
    d = jnp.arange(out_size, dtype=jnp.float32)
    src = jnp.maximum((d + 0.5) * scale - 0.5, 0.0)
    i0 = jnp.minimum(jnp.floor(src).astype(jnp.int32), in_size - 1)
    i1 = jnp.minimum(i0 + 1, in_size - 1)
    w1 = src - i0.astype(jnp.float32)
    return i0, i1, 1.0 - w1, w1


def _bilinear_resize_nchw(x, out_h, out_w):
    _, _, h, w = x.shape
    i0, i1, wy0, wy1 = _interp_axis(h, out_h)
    j0, j1, wx0, wx1 = _interp_axis(w, out_w)
    xr = (x[:, :, i0, :] * wy0[None, None, :, None]
          + x[:, :, i1, :] * wy1[None, None, :, None])
    out = xr[:, :, :, j0] * wx0 + xr[:, :, :, j1] * wx1
    return out


def _tap_masks(h, w):
    """(9, H*W) f32 {0,1}: per-tap validity of a 3x3 conv with 1-px zero padding."""
    ys = jnp.repeat(jnp.arange(h), w)            # row index of each flattened pos
    xs = jnp.tile(jnp.arange(w), h)              # col index
    rows = []
    for dy in (-1, 0, 1):
        for dx in (-1, 0, 1):
            ok = ((ys + dy >= 0) & (ys + dy < h) & (xs + dx >= 0) & (xs + dx < w))
            rows.append(ok)
    return jnp.stack(rows, axis=0).astype(jnp.float32)


def init_params(key, num_inputs, num_outputs):
    cin, cmid, cout = num_inputs, num_inputs, num_outputs
    ks = jax.random.split(key, 12)

    def conv_block_params(kw, kb, kg, kbeta, km, kv, c_in, c_out):
        fan_in = c_in * 9
        w = jax.random.normal(kw, (c_out, c_in, 3, 3), jnp.float32) / jnp.sqrt(fan_in)
        b = 0.05 * jax.random.normal(kb, (c_out,), jnp.float32)
        gamma = 1.0 + 0.1 * jax.random.normal(kg, (c_out,), jnp.float32)
        beta = 0.1 * jax.random.normal(kbeta, (c_out,), jnp.float32)
        mean = 0.1 * jax.random.normal(km, (c_out,), jnp.float32)
        var = jax.random.uniform(kv, (c_out,), jnp.float32, minval=0.5, maxval=1.5)
        scale = gamma / jnp.sqrt(var + BN_EPS)          # fold BN (eval mode)
        bias = (b - mean) * scale + beta                # fold conv bias + BN
        return w, scale, bias

    w1, s1, b1 = conv_block_params(*ks[0:6], cin, cmid)
    w2, s2, b2 = conv_block_params(*ks[6:12], cmid, cout)
    return dict(w1=w1, s1=s1, b1=b1, w2=w2, s2=s2, b2=b2)


def up_transition_forward(x1, x2, params):
    """x1, x2: NCHW float32.  Returns NCHW float32 (matches the PyTorch module)."""
    n, c1, _, _ = x1.shape
    _, c2, h, w = x2.shape
    cin = c1 + c2
    cmid, cout = params['w1'].shape[0], params['w2'].shape[0]
    assert cmid == cin, "UpTransition uses ConvBlock(num_inputs, num_inputs) first"
    hw = h * w

    # glue: bilinear upsample x1 to x2's spatial size (NCHW, no layout transposes),
    # flatten spatial.  No jnp.pad (halo handled by in-kernel masks) and no HBM
    # channel concat (it happens on the patches' K axis inside the kernel).
    x1u = _bilinear_resize_nchw(x1, h, w).reshape(n, c1, hw)
    x2r = x2.reshape(n, c2, hw)

    # weights: OIHW -> (O, 9*I), K index = (ky*3 + kx)*I + i ; bf16 for the MXU.
    w1f = jnp.transpose(params['w1'], (0, 2, 3, 1)).reshape(cmid, 9 * cin)
    w2f = jnp.transpose(params['w2'], (0, 2, 3, 1)).reshape(cout, 9 * cmid)
    w1f = w1f.astype(jnp.bfloat16)
    w2f = w2f.astype(jnp.bfloat16)
    s1 = params['s1'].reshape(cmid, 1)
    b1 = params['b1'].reshape(cmid, 1)
    s2 = params['s2'].reshape(cout, 1)
    b2 = params['b2'].reshape(cout, 1)

    masks = _tap_masks(h, w)                                        # (9, HW)
    taps = tuple(dy * w + dx for dy in (-1, 0, 1) for dx in (-1, 0, 1))

    kernel = functools.partial(_up_transition_kernel, taps=taps, hw=hw)

    out = pl.pallas_call(
        kernel,
        out_shape=jax.ShapeDtypeStruct((n, cout, hw), jnp.float32),
        grid_spec=pltpu.PrefetchScalarGridSpec(
            num_scalar_prefetch=0,
            grid=(n,),
            in_specs=[
                pl.BlockSpec((1, c2, hw), lambda i: (i, 0, 0)),
                pl.BlockSpec((1, c1, hw), lambda i: (i, 0, 0)),
                pl.BlockSpec((cmid, 9 * cin), lambda i: (0, 0)),
                pl.BlockSpec((cmid, 1), lambda i: (0, 0)),
                pl.BlockSpec((cmid, 1), lambda i: (0, 0)),
                pl.BlockSpec((cout, 9 * cmid), lambda i: (0, 0)),
                pl.BlockSpec((cout, 1), lambda i: (0, 0)),
                pl.BlockSpec((cout, 1), lambda i: (0, 0)),
                pl.BlockSpec((9, hw), lambda i: (0, 0)),
            ],
            out_specs=pl.BlockSpec((1, cout, hw), lambda i: (i, 0, 0)),
            scratch_shapes=[pltpu.VMEM((9 * cin, hw), jnp.bfloat16)],
        ),
        compiler_params=pltpu.CompilerParams(
            dimension_semantics=("parallel",),   # v7x: one batch elem per TC
            # above the 16 MiB v5e default; raise further for large feature maps
            vmem_limit_bytes=32 * 1024 * 1024,
        ),
    )(x2r, x1u, w1f, s1, b1, w2f, s2, b2, masks)

    return out.reshape(n, cout, h, w)


# --------------------------- pure-JAX reference ------------------------------
def _conv_bn_lrelu_ref(x_nchw, w_oihw, scale, bias):
    # Matches the kernel's numerics: bf16 conv operands, f32 accumulation.
    y = jax.lax.conv_general_dilated(
        x_nchw.astype(jnp.bfloat16), w_oihw.astype(jnp.bfloat16),
        window_strides=(1, 1), padding=((1, 1), (1, 1)),
        dimension_numbers=('NCHW', 'OIHW', 'NCHW'),
        preferred_element_type=jnp.float32)
    y = y * scale[None, :, None, None] + bias[None, :, None, None]
    return jnp.where(y > 0, y, LEAKY_SLOPE * y)


def up_transition_reference(x1, x2, params):
    _, _, h, w = x2.shape
    x1u = _bilinear_resize_nchw(x1, h, w)
    x = jnp.concatenate([x2, x1u], axis=1)      # == torch.cat([x2, x1], dim=1)
    y = _conv_bn_lrelu_ref(x, params['w1'], params['s1'], params['b1'])
    y = _conv_bn_lrelu_ref(y, params['w2'], params['s2'], params['b2'])
    return y


# --------------------------------- main ---------------------------------------
if __name__ == "__main__":
    key = jax.random.PRNGKey(0)
    kx1, kx2, kp = jax.random.split(key, 3)

    N, C1, C2 = 2, 8, 8          # num_inputs = C1 + C2 = 16
    NUM_OUT = 8                  # num_outputs
    H1 = W1 = 8                  # x1 spatial (to be upsampled)
    H2 = W2 = 16                 # x2 spatial (target size)

    x1 = jax.random.normal(kx1, (N, C1, H1, W1), jnp.float32)
    x2 = jax.random.normal(kx2, (N, C2, H2, W2), jnp.float32)
    params = init_params(kp, num_inputs=C1 + C2, num_outputs=NUM_OUT)

    fwd = jax.jit(up_transition_forward)
    out = jax.block_until_ready(fwd(x1, x2, params))
    assert out.shape == (N, NUM_OUT, H2, W2), out.shape

    ref = jax.block_until_ready(up_transition_reference(x1, x2, params))
    max_err = float(jnp.max(jnp.abs(out - ref)))
    # bf16-operand / f32-accumulate on both sides; tolerance absorbs the residual
    # bf16 double-rounding divergence between the two pipelines.
    if max_err > 1e-2:
        raise SystemExit(f"mismatch vs reference: max abs err = {max_err}")
    print("KERNEL_OK")
</pallas_src>

<mosaic_0001>
module attributes {stable_mosaic.version = 11 : i64} {
  func.func @_up_transition_kernel(%arg0: i32, %arg1: memref<1x8x256xf32, #tpu.memory_space<vmem>>, %arg2: memref<1x8x256xf32, #tpu.memory_space<vmem>>, %arg3: memref<16x144xbf16, #tpu.memory_space<vmem>>, %arg4: memref<16x1xf32, #tpu.memory_space<vmem>>, %arg5: memref<16x1xf32, #tpu.memory_space<vmem>>, %arg6: memref<8x144xbf16, #tpu.memory_space<vmem>>, %arg7: memref<8x1xf32, #tpu.memory_space<vmem>>, %arg8: memref<8x1xf32, #tpu.memory_space<vmem>>, %arg9: memref<9x256xf32, #tpu.memory_space<vmem>>, %arg10: memref<1x8x256xf32, #tpu.memory_space<vmem>>, %arg11: memref<144x256xbf16, #tpu.memory_space<vmem>>) attributes {dimension_semantics = [#tpu.dimension_semantics<parallel>], iteration_bounds = array<i64: 2>, scalar_prefetch = 0 : i64, scratch_operands = 1 : i64, tpu.core_type = #tpu.core_type<tc>, window_params = [{transform_indices = @transform_0, window_bounds = array<i64: 1, 8, 256>}, {transform_indices = @transform_1, window_bounds = array<i64: 1, 8, 256>}, {pipeline_mode = #tpu.pipeline_mode<synchronous>, transform_indices = @transform_2, window_bounds = array<i64: 16, 144>}, {pipeline_mode = #tpu.pipeline_mode<synchronous>, transform_indices = @transform_3, window_bounds = array<i64: 16, 1>}, {pipeline_mode = #tpu.pipeline_mode<synchronous>, transform_indices = @transform_4, window_bounds = array<i64: 16, 1>}, {pipeline_mode = #tpu.pipeline_mode<synchronous>, transform_indices = @transform_5, window_bounds = array<i64: 8, 144>}, {pipeline_mode = #tpu.pipeline_mode<synchronous>, transform_indices = @transform_6, window_bounds = array<i64: 8, 1>}, {pipeline_mode = #tpu.pipeline_mode<synchronous>, transform_indices = @transform_7, window_bounds = array<i64: 8, 1>}, {pipeline_mode = #tpu.pipeline_mode<synchronous>, transform_indices = @transform_8, window_bounds = array<i64: 9, 256>}, {transform_indices = @transform_9, window_bounds = array<i64: 1, 8, 256>}]} {
    %c0 = arith.constant 0 : index
    %c0_0 = arith.constant 0 : index
    %0 = vector.load %arg9[%c0, %c0_0] : memref<9x256xf32, #tpu.memory_space<vmem>>, vector<9x256xf32>
    %c0_1 = arith.constant 0 : index
    %c0_2 = arith.constant 0 : index
    %c0_3 = arith.constant 0 : index
    %1 = vector.load %arg1[%c0_1, %c0_2, %c0_3] : memref<1x8x256xf32, #tpu.memory_space<vmem>>, vector<1x8x256xf32>
    %2 = vector.shape_cast %1 : vector<1x8x256xf32> to vector<8x256xf32>
    %c0_4 = arith.constant 0 : index
    %c0_5 = arith.constant 0 : index
    %c0_6 = arith.constant 0 : index
    %3 = vector.load %arg2[%c0_4, %c0_5, %c0_6] : memref<1x8x256xf32, #tpu.memory_space<vmem>>, vector<1x8x256xf32>
    %4 = vector.shape_cast %3 : vector<1x8x256xf32> to vector<8x256xf32>
    %5 = tpu.concatenate %2, %4 in 0 : vector<8x256xf32>, vector<8x256xf32> -> vector<16x256xf32>
    %6 = tpu.concatenate %5, %5 in 1 : vector<16x256xf32>, vector<16x256xf32> -> vector<16x512xf32>
    %7 = vector.extract_strided_slice %6 {offsets = [0, 239], sizes = [16, 256], strides = [1, 1]} : vector<16x512xf32> to vector<16x256xf32>
    %8 = vector.extract_strided_slice %0 {offsets = [0, 0], sizes = [1, 256], strides = [1, 1]} : vector<9x256xf32> to vector<1x256xf32>
    %9 = vector.broadcast %8 : vector<1x256xf32> to vector<16x256xf32>
    %10 = arith.mulf %7, %9 : vector<16x256xf32>
    %11 = arith.truncf %10 : vector<16x256xf32> to vector<16x256xbf16>
    %c0_7 = arith.constant 0 : index
    %c0_8 = arith.constant 0 : index
    %12 = vector.load %arg11[%c0_7, %c0_8] : memref<144x256xbf16, #tpu.memory_space<vmem>>, vector<16x256xbf16>
    tpu.vector_store %arg11[%c0_7, %c0_8], %11 {strides = array<i32>} : memref<144x256xbf16, #tpu.memory_space<vmem>>, vector<16x256xbf16>,
    %13 = vector.extract_strided_slice %6 {offsets = [0, 240], sizes = [16, 256], strides = [1, 1]} : vector<16x512xf32> to vector<16x256xf32>
    %14 = vector.extract_strided_slice %0 {offsets = [1, 0], sizes = [1, 256], strides = [1, 1]} : vector<9x256xf32> to vector<1x256xf32>
    %15 = vector.broadcast %14 : vector<1x256xf32> to vector<16x256xf32>
    %16 = arith.mulf %13, %15 : vector<16x256xf32>
    %17 = arith.truncf %16 : vector<16x256xf32> to vector<16x256xbf16>
    %c16 = arith.constant 16 : index
    %c0_9 = arith.constant 0 : index
    %18 = vector.load %arg11[%c16, %c0_9] : memref<144x256xbf16, #tpu.memory_space<vmem>>, vector<16x256xbf16>
    tpu.vector_store %arg11[%c16, %c0_9], %17 {strides = array<i32>} : memref<144x256xbf16, #tpu.memory_space<vmem>>, vector<16x256xbf16>,
    %19 = vector.extract_strided_slice %6 {offsets = [0, 241], sizes = [16, 256], strides = [1, 1]} : vector<16x512xf32> to vector<16x256xf32>
    %20 = vector.extract_strided_slice %0 {offsets = [2, 0], sizes = [1, 256], strides = [1, 1]} : vector<9x256xf32> to vector<1x256xf32>
    %21 = vector.broadcast %20 : vector<1x256xf32> to vector<16x256xf32>
    %22 = arith.mulf %19, %21 : vector<16x256xf32>
    %23 = arith.truncf %22 : vector<16x256xf32> to vector<16x256xbf16>
    %c32 = arith.constant 32 : index
    %c0_10 = arith.constant 0 : index
    %24 = vector.load %arg11[%c32, %c0_10] : memref<144x256xbf16, #tpu.memory_space<vmem>>, vector<16x256xbf16>
    tpu.vector_store %arg11[%c32, %c0_10], %23 {strides = array<i32>} : memref<144x256xbf16, #tpu.memory_space<vmem>>, vector<16x256xbf16>,
    %25 = vector.extract_strided_slice %6 {offsets = [0, 255], sizes = [16, 256], strides = [1, 1]} : vector<16x512xf32> to vector<16x256xf32>
    %26 = vector.extract_strided_slice %0 {offsets = [3, 0], sizes = [1, 256], strides = [1, 1]} : vector<9x256xf32> to vector<1x256xf32>
    %27 = vector.broadcast %26 : vector<1x256xf32> to vector<16x256xf32>
    %28 = arith.mulf %25, %27 : vector<16x256xf32>
    %29 = arith.truncf %28 : vector<16x256xf32> to vector<16x256xbf16>
    %c48 = arith.constant 48 : index
    %c0_11 = arith.constant 0 : index
    %30 = vector.load %arg11[%c48, %c0_11] : memref<144x256xbf16, #tpu.memory_space<vmem>>, vector<16x256xbf16>
    tpu.vector_store %arg11[%c48, %c0_11], %29 {strides = array<i32>} : memref<144x256xbf16, #tpu.memory_space<vmem>>, vector<16x256xbf16>,
    %31 = vector.extract_strided_slice %6 {offsets = [0, 0], sizes = [16, 256], strides = [1, 1]} : vector<16x512xf32> to vector<16x256xf32>
    %32 = vector.extract_strided_slice %0 {offsets = [4, 0], sizes = [1, 256], strides = [1, 1]} : vector<9x256xf32> to vector<1x256xf32>
    %33 = vector.broadcast %32 : vector<1x256xf32> to vector<16x256xf32>
    %34 = arith.mulf %31, %33 : vector<16x256xf32>
    %35 = arith.truncf %34 : vector<16x256xf32> to vector<16x256xbf16>
    %c64 = arith.constant 64 : index
    %c0_12 = arith.constant 0 : index
    %36 = vector.load %arg11[%c64, %c0_12] : memref<144x256xbf16, #tpu.memory_space<vmem>>, vector<16x256xbf16>
    tpu.vector_store %arg11[%c64, %c0_12], %35 {strides = array<i32>} : memref<144x256xbf16, #tpu.memory_space<vmem>>, vector<16x256xbf16>,
    %37 = vector.extract_strided_slice %6 {offsets = [0, 1], sizes = [16, 256], strides = [1, 1]} : vector<16x512xf32> to vector<16x256xf32>
    %38 = vector.extract_strided_slice %0 {offsets = [5, 0], sizes = [1, 256], strides = [1, 1]} : vector<9x256xf32> to vector<1x256xf32>
    %39 = vector.broadcast %38 : vector<1x256xf32> to vector<16x256xf32>
    %40 = arith.mulf %37, %39 : vector<16x256xf32>
    %41 = arith.truncf %40 : vector<16x256xf32> to vector<16x256xbf16>
    %c80 = arith.constant 80 : index
    %c0_13 = arith.constant 0 : index
    %42 = vector.load %arg11[%c80, %c0_13] : memref<144x256xbf16, #tpu.memory_space<vmem>>, vector<16x256xbf16>
    tpu.vector_store %arg11[%c80, %c0_13], %41 {strides = array<i32>} : memref<144x256xbf16, #tpu.memory_space<vmem>>, vector<16x256xbf16>,
    %43 = vector.extract_strided_slice %6 {offsets = [0, 15], sizes = [16, 256], strides = [1, 1]} : vector<16x512xf32> to vector<16x256xf32>
    %44 = vector.extract_strided_slice %0 {offsets = [6, 0], sizes = [1, 256], strides = [1, 1]} : vector<9x256xf32> to vector<1x256xf32>
    %45 = vector.broadcast %44 : vector<1x256xf32> to vector<16x256xf32>
    %46 = arith.mulf %43, %45 : vector<16x256xf32>
    %47 = arith.truncf %46 : vector<16x256xf32> to vector<16x256xbf16>
    %c96 = arith.constant 96 : index
    %c0_14 = arith.constant 0 : index
    %48 = vector.load %arg11[%c96, %c0_14] : memref<144x256xbf16, #tpu.memory_space<vmem>>, vector<16x256xbf16>
    tpu.vector_store %arg11[%c96, %c0_14], %47 {strides = array<i32>} : memref<144x256xbf16, #tpu.memory_space<vmem>>, vector<16x256xbf16>,
    %49 = vector.extract_strided_slice %6 {offsets = [0, 16], sizes = [16, 256], strides = [1, 1]} : vector<16x512xf32> to vector<16x256xf32>
    %50 = vector.extract_strided_slice %0 {offsets = [7, 0], sizes = [1, 256], strides = [1, 1]} : vector<9x256xf32> to vector<1x256xf32>
    %51 = vector.broadcast %50 : vector<1x256xf32> to vector<16x256xf32>
    %52 = arith.mulf %49, %51 : vector<16x256xf32>
    %53 = arith.truncf %52 : vector<16x256xf32> to vector<16x256xbf16>
    %c112 = arith.constant 112 : index
    %c0_15 = arith.constant 0 : index
    %54 = vector.load %arg11[%c112, %c0_15] : memref<144x256xbf16, #tpu.memory_space<vmem>>, vector<16x256xbf16>
    tpu.vector_store %arg11[%c112, %c0_15], %53 {strides = array<i32>} : memref<144x256xbf16, #tpu.memory_space<vmem>>, vector<16x256xbf16>,
    %55 = vector.extract_strided_slice %6 {offsets = [0, 17], sizes = [16, 256], strides = [1, 1]} : vector<16x512xf32> to vector<16x256xf32>
    %56 = vector.extract_strided_slice %0 {offsets = [8, 0], sizes = [1, 256], strides = [1, 1]} : vector<9x256xf32> to vector<1x256xf32>
    %57 = vector.broadcast %56 : vector<1x256xf32> to vector<16x256xf32>
    %58 = arith.mulf %55, %57 : vector<16x256xf32>
    %59 = arith.truncf %58 : vector<16x256xf32> to vector<16x256xbf16>
    %c128 = arith.constant 128 : index
    %c0_16 = arith.constant 0 : index
    %60 = vector.load %arg11[%c128, %c0_16] : memref<144x256xbf16, #tpu.memory_space<vmem>>, vector<16x256xbf16>
    tpu.vector_store %arg11[%c128, %c0_16], %59 {strides = array<i32>} : memref<144x256xbf16, #tpu.memory_space<vmem>>, vector<16x256xbf16>,
    %c0_17 = arith.constant 0 : index
    %c0_18 = arith.constant 0 : index
    %61 = vector.load %arg3[%c0_17, %c0_18] : memref<16x144xbf16, #tpu.memory_space<vmem>>, vector<16x144xbf16>
    %c0_19 = arith.constant 0 : index
    %c0_20 = arith.constant 0 : index
    %62 = vector.load %arg11[%c0_19, %c0_20] : memref<144x256xbf16, #tpu.memory_space<vmem>>, vector<144x256xbf16>
    %cst = arith.constant dense<0.000000e+00> : vector<16x256xf32>
    %63 = tpu.matmul %61, %62, %cst {dimension_numbers = #tpu.dot_dimension_numbers<[1], [0], [0], [1], [0, 0, 1, 1], [], []>} : vector<16x144xbf16>, vector<144x256xbf16>, vector<16x256xf32> -> vector<16x256xf32>
    %c0_21 = arith.constant 0 : index
    %c0_22 = arith.constant 0 : index
    %64 = vector.load %arg4[%c0_21, %c0_22] : memref<16x1xf32, #tpu.memory_space<vmem>>, vector<16x1xf32>
    %65 = vector.broadcast %64 : vector<16x1xf32> to vector<16x256xf32>
    %66 = arith.mulf %63, %65 : vector<16x256xf32>
    %c0_23 = arith.constant 0 : index
    %c0_24 = arith.constant 0 : index
    %67 = vector.load %arg5[%c0_23, %c0_24] : memref<16x1xf32, #tpu.memory_space<vmem>>, vector<16x1xf32>
    %68 = vector.broadcast %67 : vector<16x1xf32> to vector<16x256xf32>
    %69 = arith.addf %66, %68 : vector<16x256xf32>
    %cst_25 = arith.constant 0.000000e+00 : f32
    %70 = vector.broadcast %cst_25 : f32 to vector<16x256xf32>
    %71 = arith.cmpf ogt, %69, %70 : vector<16x256xf32>
    %cst_26 = arith.constant 1.000000e-01 : f32
    %72 = vector.broadcast %cst_26 : f32 to vector<16x256xf32>
    %73 = arith.mulf %72, %69 : vector<16x256xf32>
    %74 = arith.select %71, %69, %73 : vector<16x256xi1>, vector<16x256xf32>
    %75 = tpu.concatenate %74, %74 in 1 : vector<16x256xf32>, vector<16x256xf32> -> vector<16x512xf32>
    %76 = vector.extract_strided_slice %75 {offsets = [0, 239], sizes = [16, 256], strides = [1, 1]} : vector<16x512xf32> to vector<16x256xf32>
    %77 = vector.extract_strided_slice %0 {offsets = [0, 0], sizes = [1, 256], strides = [1, 1]} : vector<9x256xf32> to vector<1x256xf32>
    %78 = vector.broadcast %77 : vector<1x256xf32> to vector<16x256xf32>
    %79 = arith.mulf %76, %78 : vector<16x256xf32>
    %80 = arith.truncf %79 : vector<16x256xf32> to vector<16x256xbf16>
    %c0_27 = arith.constant 0 : index
    %c0_28 = arith.constant 0 : index
    %81 = vector.load %arg11[%c0_27, %c0_28] : memref<144x256xbf16, #tpu.memory_space<vmem>>, vector<16x256xbf16>
    tpu.vector_store %arg11[%c0_27, %c0_28], %80 {strides = array<i32>} : memref<144x256xbf16, #tpu.memory_space<vmem>>, vector<16x256xbf16>,
    %82 = vector.extract_strided_slice %75 {offsets = [0, 240], sizes = [16, 256], strides = [1, 1]} : vector<16x512xf32> to vector<16x256xf32>
    %83 = vector.extract_strided_slice %0 {offsets = [1, 0], sizes = [1, 256], strides = [1, 1]} : vector<9x256xf32> to vector<1x256xf32>
    %84 = vector.broadcast %83 : vector<1x256xf32> to vector<16x256xf32>
    %85 = arith.mulf %82, %84 : vector<16x256xf32>
    %86 = arith.truncf %85 : vector<16x256xf32> to vector<16x256xbf16>
    %c16_29 = arith.constant 16 : index
    %c0_30 = arith.constant 0 : index
    %87 = vector.load %arg11[%c16_29, %c0_30] : memref<144x256xbf16, #tpu.memory_space<vmem>>, vector<16x256xbf16>
    tpu.vector_store %arg11[%c16_29, %c0_30], %86 {strides = array<i32>} : memref<144x256xbf16, #tpu.memory_space<vmem>>, vector<16x256xbf16>,
    %88 = vector.extract_strided_slice %75 {offsets = [0, 241], sizes = [16, 256], strides = [1, 1]} : vector<16x512xf32> to vector<16x256xf32>
    %89 = vector.extract_strided_slice %0 {offsets = [2, 0], sizes = [1, 256], strides = [1, 1]} : vector<9x256xf32> to vector<1x256xf32>
    %90 = vector.broadcast %89 : vector<1x256xf32> to vector<16x256xf32>
    %91 = arith.mulf %88, %90 : vector<16x256xf32>
    %92 = arith.truncf %91 : vector<16x256xf32> to vector<16x256xbf16>
    %c32_31 = arith.constant 32 : index
    %c0_32 = arith.constant 0 : index
    %93 = vector.load %arg11[%c32_31, %c0_32] : memref<144x256xbf16, #tpu.memory_space<vmem>>, vector<16x256xbf16>
    tpu.vector_store %arg11[%c32_31, %c0_32], %92 {strides = array<i32>} : memref<144x256xbf16, #tpu.memory_space<vmem>>, vector<16x256xbf16>,
    %94 = vector.extract_strided_slice %75 {offsets = [0, 255], sizes = [16, 256], strides = [1, 1]} : vector<16x512xf32> to vector<16x256xf32>
    %95 = vector.extract_strided_slice %0 {offsets = [3, 0], sizes = [1, 256], strides = [1, 1]} : vector<9x256xf32> to vector<1x256xf32>
    %96 = vector.broadcast %95 : vector<1x256xf32> to vector<16x256xf32>
    %97 = arith.mulf %94, %96 : vector<16x256xf32>
    %98 = arith.truncf %97 : vector<16x256xf32> to vector<16x256xbf16>
    %c48_33 = arith.constant 48 : index
    %c0_34 = arith.constant 0 : index
    %99 = vector.load %arg11[%c48_33, %c0_34] : memref<144x256xbf16, #tpu.memory_space<vmem>>, vector<16x256xbf16>
    tpu.vector_store %arg11[%c48_33, %c0_34], %98 {strides = array<i32>} : memref<144x256xbf16, #tpu.memory_space<vmem>>, vector<16x256xbf16>,
    %100 = vector.extract_strided_slice %75 {offsets = [0, 0], sizes = [16, 256], strides = [1, 1]} : vector<16x512xf32> to vector<16x256xf32>
    %101 = vector.extract_strided_slice %0 {offsets = [4, 0], sizes = [1, 256], strides = [1, 1]} : vector<9x256xf32> to vector<1x256xf32>
    %102 = vector.broadcast %101 : vector<1x256xf32> to vector<16x256xf32>
    %103 = arith.mulf %100, %102 : vector<16x256xf32>
    %104 = arith.truncf %103 : vector<16x256xf32> to vector<16x256xbf16>
    %c64_35 = arith.constant 64 : index
    %c0_36 = arith.constant 0 : index
    %105 = vector.load %arg11[%c64_35, %c0_36] : memref<144x256xbf16, #tpu.memory_space<vmem>>, vector<16x256xbf16>
    tpu.vector_store %arg11[%c64_35, %c0_36], %104 {strides = array<i32>} : memref<144x256xbf16, #tpu.memory_space<vmem>>, vector<16x256xbf16>,
    %106 = vector.extract_strided_slice %75 {offsets = [0, 1], sizes = [16, 256], strides = [1, 1]} : vector<16x512xf32> to vector<16x256xf32>
    %107 = vector.extract_strided_slice %0 {offsets = [5, 0], sizes = [1, 256], strides = [1, 1]} : vector<9x256xf32> to vector<1x256xf32>
    %108 = vector.broadcast %107 : vector<1x256xf32> to vector<16x256xf32>
    %109 = arith.mulf %106, %108 : vector<16x256xf32>
    %110 = arith.truncf %109 : vector<16x256xf32> to vector<16x256xbf16>
    %c80_37 = arith.constant 80 : index
    %c0_38 = arith.constant 0 : index
    %111 = vector.load %arg11[%c80_37, %c0_38] : memref<144x256xbf16, #tpu.memory_space<vmem>>, vector<16x256xbf16>
    tpu.vector_store %arg11[%c80_37, %c0_38], %110 {strides = array<i32>} : memref<144x256xbf16, #tpu.memory_space<vmem>>, vector<16x256xbf16>,
    %112 = vector.extract_strided_slice %75 {offsets = [0, 15], sizes = [16, 256], strides = [1, 1]} : vector<16x512xf32> to vector<16x256xf32>
    %113 = vector.extract_strided_slice %0 {offsets = [6, 0], sizes = [1, 256], strides = [1, 1]} : vector<9x256xf32> to vector<1x256xf32>
    %114 = vector.broadcast %113 : vector<1x256xf32> to vector<16x256xf32>
    %115 = arith.mulf %112, %114 : vector<16x256xf32>
    %116 = arith.truncf %115 : vector<16x256xf32> to vector<16x256xbf16>
    %c96_39 = arith.constant 96 : index
    %c0_40 = arith.constant 0 : index
    %117 = vector.load %arg11[%c96_39, %c0_40] : memref<144x256xbf16, #tpu.memory_space<vmem>>, vector<16x256xbf16>
    tpu.vector_store %arg11[%c96_39, %c0_40], %116 {strides = array<i32>} : memref<144x256xbf16, #tpu.memory_space<vmem>>, vector<16x256xbf16>,
    %118 = vector.extract_strided_slice %75 {offsets = [0, 16], sizes = [16, 256], strides = [1, 1]} : vector<16x512xf32> to vector<16x256xf32>
    %119 = vector.extract_strided_slice %0 {offsets = [7, 0], sizes = [1, 256], strides = [1, 1]} : vector<9x256xf32> to vector<1x256xf32>
    %120 = vector.broadcast %119 : vector<1x256xf32> to vector<16x256xf32>
    %121 = arith.mulf %118, %120 : vector<16x256xf32>
    %122 = arith.truncf %121 : vector<16x256xf32> to vector<16x256xbf16>
    %c112_41 = arith.constant 112 : index
    %c0_42 = arith.constant 0 : index
    %123 = vector.load %arg11[%c112_41, %c0_42] : memref<144x256xbf16, #tpu.memory_space<vmem>>, vector<16x256xbf16>
    tpu.vector_store %arg11[%c112_41, %c0_42], %122 {strides = array<i32>} : memref<144x256xbf16, #tpu.memory_space<vmem>>, vector<16x256xbf16>,
    %124 = vector.extract_strided_slice %75 {offsets = [0, 17], sizes = [16, 256], strides = [1, 1]} : vector<16x512xf32> to vector<16x256xf32>
    %125 = vector.extract_strided_slice %0 {offsets = [8, 0], sizes = [1, 256], strides = [1, 1]} : vector<9x256xf32> to vector<1x256xf32>
    %126 = vector.broadcast %125 : vector<1x256xf32> to vector<16x256xf32>
    %127 = arith.mulf %124, %126 : vector<16x256xf32>
    %128 = arith.truncf %127 : vector<16x256xf32> to vector<16x256xbf16>
    %c128_43 = arith.constant 128 : index
    %c0_44 = arith.constant 0 : index
    %129 = vector.load %arg11[%c128_43, %c0_44] : memref<144x256xbf16, #tpu.memory_space<vmem>>, vector<16x256xbf16>
    tpu.vector_store %arg11[%c128_43, %c0_44], %128 {strides = array<i32>} : memref<144x256xbf16, #tpu.memory_space<vmem>>, vector<16x256xbf16>,
    %c0_45 = arith.constant 0 : index
    %c0_46 = arith.constant 0 : index
    %130 = vector.load %arg6[%c0_45, %c0_46] : memref<8x144xbf16, #tpu.memory_space<vmem>>, vector<8x144xbf16>
    %c0_47 = arith.constant 0 : index
    %c0_48 = arith.constant 0 : index
    %131 = vector.load %arg11[%c0_47, %c0_48] : memref<144x256xbf16, #tpu.memory_space<vmem>>, vector<144x256xbf16>
    %cst_49 = arith.constant dense<0.000000e+00> : vector<8x256xf32>
    %132 = tpu.matmul %130, %131, %cst_49 {dimension_numbers = #tpu.dot_dimension_numbers<[1], [0], [0], [1], [0, 0, 1, 1], [], []>} : vector<8x144xbf16>, vector<144x256xbf16>, vector<8x256xf32> -> vector<8x256xf32>
    %c0_50 = arith.constant 0 : index
    %c0_51 = arith.constant 0 : index
    %133 = vector.load %arg7[%c0_50, %c0_51] : memref<8x1xf32, #tpu.memory_space<vmem>>, vector<8x1xf32>
    %134 = vector.broadcast %133 : vector<8x1xf32> to vector<8x256xf32>
    %135 = arith.mulf %132, %134 : vector<8x256xf32>
    %c0_52 = arith.constant 0 : index
    %c0_53 = arith.constant 0 : index
    %136 = vector.load %arg8[%c0_52, %c0_53] : memref<8x1xf32, #tpu.memory_space<vmem>>, vector<8x1xf32>
    %137 = vector.broadcast %136 : vector<8x1xf32> to vector<8x256xf32>
    %138 = arith.addf %135, %137 : vector<8x256xf32>
    %cst_54 = arith.constant 0.000000e+00 : f32
    %139 = vector.broadcast %cst_54 : f32 to vector<8x256xf32>
    %140 = arith.cmpf ogt, %138, %139 : vector<8x256xf32>
    %cst_55 = arith.constant 1.000000e-01 : f32
    %141 = vector.broadcast %cst_55 : f32 to vector<8x256xf32>
    %142 = arith.mulf %141, %138 : vector<8x256xf32>
    %143 = arith.select %140, %138, %142 : vector<8x256xi1>, vector<8x256xf32>
    %c0_56 = arith.constant 0 : index
    %c0_57 = arith.constant 0 : index
    %c0_58 = arith.constant 0 : index
    %144 = vector.load %arg10[%c0_56, %c0_57, %c0_58] : memref<1x8x256xf32, #tpu.memory_space<vmem>>, vector<1x8x256xf32>
    %145 = vector.shape_cast %144 : vector<1x8x256xf32> to vector<8x256xf32>
    %146 = vector.shape_cast %143 : vector<8x256xf32> to vector<1x8x256xf32>
    tpu.vector_store %arg10[%c0_56, %c0_57, %c0_58], %146 {strides = array<i32>} : memref<1x8x256xf32, #tpu.memory_space<vmem>>, vector<1x8x256xf32>,
    return
  }
  func.func @transform_0(%arg0: i32) -> (i32, i32, i32) {
    %c0_i32 = arith.constant 0 : i32
    %c0_i32_0 = arith.constant 0 : i32
    %c0_i32_1 = arith.constant 0 : i32
    return %arg0, %c0_i32, %c0_i32_0 : i32, i32, i32
  }
  func.func @transform_1(%arg0: i32) -> (i32, i32, i32) {
    %c0_i32 = arith.constant 0 : i32
    %c0_i32_0 = arith.constant 0 : i32
    %c0_i32_1 = arith.constant 0 : i32
    return %arg0, %c0_i32, %c0_i32_0 : i32, i32, i32
  }
  func.func @transform_2(%arg0: i32) -> (i32, i32) {
    %c0_i32 = arith.constant 0 : i32
    %c0_i32_0 = arith.constant 0 : i32
    %c0_i32_1 = arith.constant 0 : i32
    return %c0_i32, %c0_i32_0 : i32, i32
  }
  func.func @transform_3(%arg0: i32) -> (i32, i32) {
    %c0_i32 = arith.constant 0 : i32
    %c0_i32_0 = arith.constant 0 : i32
    %c0_i32_1 = arith.constant 0 : i32
    return %c0_i32, %c0_i32_0 : i32, i32
  }
  func.func @transform_4(%arg0: i32) -> (i32, i32) {
    %c0_i32 = arith.constant 0 : i32
    %c0_i32_0 = arith.constant 0 : i32
    %c0_i32_1 = arith.constant 0 : i32
    return %c0_i32, %c0_i32_0 : i32, i32
  }
  func.func @transform_5(%arg0: i32) -> (i32, i32) {
    %c0_i32 = arith.constant 0 : i32
    %c0_i32_0 = arith.constant 0 : i32
    %c0_i32_1 = arith.constant 0 : i32
    return %c0_i32, %c0_i32_0 : i32, i32
  }
  func.func @transform_6(%arg0: i32) -> (i32, i32) {
    %c0_i32 = arith.constant 0 : i32
    %c0_i32_0 = arith.constant 0 : i32
    %c0_i32_1 = arith.constant 0 : i32
    return %c0_i32, %c0_i32_0 : i32, i32
  }
  func.func @transform_7(%arg0: i32) -> (i32, i32) {
    %c0_i32 = arith.constant 0 : i32
    %c0_i32_0 = arith.constant 0 : i32
    %c0_i32_1 = arith.constant 0 : i32
    return %c0_i32, %c0_i32_0 : i32, i32
  }
  func.func @transform_8(%arg0: i32) -> (i32, i32) {
    %c0_i32 = arith.constant 0 : i32
    %c0_i32_0 = arith.constant 0 : i32
    %c0_i32_1 = arith.constant 0 : i32
    return %c0_i32, %c0_i32_0 : i32, i32
  }
  func.func @transform_9(%arg0: i32) -> (i32, i32, i32) {
    %c0_i32 = arith.constant 0 : i32
    %c0_i32_0 = arith.constant 0 : i32
    %c0_i32_1 = arith.constant 0 : i32
    return %arg0, %c0_i32, %c0_i32_0 : i32, i32, i32
  }
}

</mosaic_0001>

<llo_original>
// kernel: up_transition_forward.1
$region0: #{up_transition_forward.1}
  #allocation0 [shape = 'u32[]', space=smem, size = 0x4, offset = 0x4, fixed_abs, tag = 'smem constant byte address 0x4 - core index']
  #allocation1 [shape = 'u32[144,128]{1,0:T(1,128)}', space=vmem, size = 0x12000, scoped, tag = 'internal scratch']
  #allocation2 [shape = 'bf16[144,256]{1,0:T(16,128)(2,1)}', space=vmem, size = 0x12000, scoped, tag = 'scratch operand']
  %s0 = inlined_call_operand.vmem [shape: f32[2,8,256], index: 0, kind: input, shape index: {}]
  %s1 = inlined_call_operand.vmem [shape: f32[2,8,256], index: 1, kind: input, shape index: {}]
  %s2 = inlined_call_operand.vmem [shape: bf16[16,144], index: 2, kind: input, shape index: {}]
  %s3 = inlined_call_operand.vmem [shape: f32[16,1], index: 3, kind: input, shape index: {}]
  %s4 = inlined_call_operand.vmem [shape: f32[16,1], index: 4, kind: input, shape index: {}]
  %s5 = inlined_call_operand.vmem [shape: bf16[8,144], index: 5, kind: input, shape index: {}]
  %s6 = inlined_call_operand.vmem [shape: f32[8,1], index: 6, kind: input, shape index: {}]
  %s7 = inlined_call_operand.vmem [shape: f32[8,1], index: 7, kind: input, shape index: {}]
  %s8 = inlined_call_operand.vmem [shape: f32[9,256], index: 8, kind: input, shape index: {}]
  %s9 = inlined_call_operand.vmem [shape: f32[2,8,256], index: 9, kind: output, shape index: {}]
  %s10 = sld [smem:[#allocation0]]
  $region69: #{up_transition_forward.1} parent=0
    _
  %s12 = ssub.s32 1, %s10
  %s13 = scalar_select 0, %s12, %s10
  loop: start=0, step=1, limit=4
  $region2: #{up_transition_forward.1} parent=0 // loop_pre_header
    _
  $region3: #{up_transition_forward.1} parent=0 // loop_header
    %s15 = sphi 0, %s19
    %p16 = scmp.ge.s32.totalorder %s15, 4
    %s25 = sphi 0, %s27
    %s28 = sphi 0, %s25
    %s29 = sphi 0, %s28
    %s45 = sphi 0, %s29
    %s51 = sphi 0, %s53
    %s54 = sphi 0, %s51
    %s55 = sphi 0, %s54
    %s71 = sphi 0, %s55
    %s75 = sphi 0, %s75
    %s77 = sphi 0, %s75
    %s78 = sphi 0, %s77
    %s92 = sphi 0, %s78
    %s96 = sphi 0, %s96
    %s98 = sphi 0, %s96
    %s99 = sphi 0, %s98
    %s113 = sphi 0, %s99
    %s117 = sphi 0, %s117
    %s119 = sphi 0, %s117
    %s120 = sphi 0, %s119
    %s134 = sphi 0, %s120
    %s138 = sphi 0, %s138
    %s140 = sphi 0, %s138
    %s141 = sphi 0, %s140
    %s155 = sphi 0, %s141
    %s159 = sphi 0, %s159
    %s161 = sphi 0, %s159
    %s162 = sphi 0, %s161
    %s176 = sphi 0, %s162
    %s180 = sphi 0, %s180
    %s182 = sphi 0, %s180
    %s183 = sphi 0, %s182
    %s197 = sphi 0, %s183
    %s201 = sphi 0, %s201
    %s203 = sphi 0, %s201
    %s204 = sphi 0, %s203
    %s218 = sphi 0, %s204
    %s224 = sphi 0, %s226
    %s227 = sphi 0, %s224
    %s228 = sphi 0, %s227
    %s244 = sphi 0, %s228
  $region4: #{up_transition_forward.1} parent=0 // loop_header_branch
    %18 = sbr.rel (%p16) target = $region8
  $region5: #{up_transition_forward.1} parent=0 // loop_body
    %s20 = ssub.s32 %s15, 1
    %s21 = ssub.s32 %s15, 2
    %s22 = sadd.s32 %s15, 1
    %s23 = ssub.s32 %s15, %s22
    %p24 = scmp.eq.s32.totalorder %s23, 0
    %s26 = sadd.s32 %s25, 1
    %s27 = scalar_select %p24, %s25, %s26
    %p30 = pneg %p24
    %p31 = scmp.eq.s32.totalorder %s15, 1
    %p32 = por %p30, %p31
    %p33 = scmp.ne.s32.totalorder %s25, %s28
    %p34 = scmp.eq.s32.totalorder %s15, 0
    %p35 = por %p33, %p34
    %p36 = scmp.ne.s32.totalorder %s25, %s28
    %p37 = scmp.eq.s32.totalorder %s20, 1
    %p38 = por %p36, %p37
    %p39 = scmp.ne.s32.totalorder %s28, %s29
    %p40 = scmp.eq.s32.totalorder %s20, 0
    %p41 = por %p39, %p40
    %p42 = scmp.ne.s32.totalorder %s28, %s29
    %p43 = scmp.eq.s32.totalorder %s21, 1
    %p44 = por %p42, %p43
    %p46 = scmp.ne.s32.totalorder %s29, %s45
    %p47 = scmp.eq.s32.totalorder %s21, 0
    %p48 = por %p46, %p47
    %s49 = ssub.s32 %s15, %s22
    %p50 = scmp.eq.s32.totalorder %s49, 0
    %s52 = sadd.s32 %s51, 1
    %s53 = scalar_select %p50, %s51, %s52
    %p56 = pneg %p50
    %p57 = scmp.eq.s32.totalorder %s15, 1
    %p58 = por %p56, %p57
    %p59 = scmp.ne.s32.totalorder %s51, %s54
    %p60 = scmp.eq.s32.totalorder %s15, 0
    %p61 = por %p59, %p60
    %p62 = scmp.ne.s32.totalorder %s51, %s54
    %p63 = scmp.eq.s32.totalorder %s20, 1
    %p64 = por %p62, %p63
    %p65 = scmp.ne.s32.totalorder %s54, %s55
    %p66 = scmp.eq.s32.totalorder %s20, 0
    %p67 = por %p65, %p66
    %p68 = scmp.ne.s32.totalorder %s54, %s55
    %p69 = scmp.eq.s32.totalorder %s21, 1
    %p70 = por %p68, %p69
    %p72 = scmp.ne.s32.totalorder %s55, %s71
    %p73 = scmp.eq.s32.totalorder %s21, 0
    %p74 = por %p72, %p73
    %s76 = sadd.s32 %s75, 1
    %p79 = scmp.eq.s32.totalorder %s15, 1
    %p80 = scmp.ne.s32.totalorder %s75, %s77
    %p81 = scmp.eq.s32.totalorder %s15, 0
    %p82 = por %p80, %p81
    %p83 = scmp.ne.s32.totalorder %s75, %s77
    %p84 = scmp.eq.s32.totalorder %s20, 1
    %p85 = por %p83, %p84
    %p86 = scmp.ne.s32.totalorder %s77, %s78
    %p87 = scmp.eq.s32.totalorder %s20, 0
    %p88 = por %p86, %p87
    %p89 = scmp.ne.s32.totalorder %s77, %s78
    %p90 = scmp.eq.s32.totalorder %s21, 1
    %p91 = por %p89, %p90
    %p93 = scmp.ne.s32.totalorder %s78, %s92
    %p94 = scmp.eq.s32.totalorder %s21, 0
    %p95 = por %p93, %p94
    %s97 = sadd.s32 %s96, 1
    %p100 = scmp.eq.s32.totalorder %s15, 1
    %p101 = scmp.ne.s32.totalorder %s96, %s98
    %p102 = scmp.eq.s32.totalorder %s15, 0
    %p103 = por %p101, %p102
    %p104 = scmp.ne.s32.totalorder %s96, %s98
    %p105 = scmp.eq.s32.totalorder %s20, 1
    %p106 = por %p104, %p105
    %p107 = scmp.ne.s32.totalorder %s98, %s99
    %p108 = scmp.eq.s32.totalorder %s20, 0
    %p109 = por %p107, %p108
    %p110 = scmp.ne.s32.totalorder %s98, %s99
    %p111 = scmp.eq.s32.totalorder %s21, 1
    %p112 = por %p110, %p111
    %p114 = scmp.ne.s32.totalorder %s99, %s113
    %p115 = scmp.eq.s32.totalorder %s21, 0
    %p116 = por %p114, %p115
    %s118 = sadd.s32 %s117, 1
    %p121 = scmp.eq.s32.totalorder %s15, 1
    %p122 = scmp.ne.s32.totalorder %s117, %s119
    %p123 = scmp.eq.s32.totalorder %s15, 0
    %p124 = por %p122, %p123
    %p125 = scmp.ne.s32.totalorder %s117, %s119
    %p126 = scmp.eq.s32.totalorder %s20, 1
    %p127 = por %p125, %p126
    %p128 = scmp.ne.s32.totalorder %s119, %s120
    %p129 = scmp.eq.s32.totalorder %s20, 0
    %p130 = por %p128, %p129
    %p131 = scmp.ne.s32.totalorder %s119, %s120
    %p132 = scmp.eq.s32.totalorder %s21, 1
    %p133 = por %p131, %p132
    %p135 = scmp.ne.s32.totalorder %s120, %s134
    %p136 = scmp.eq.s32.totalorder %s21, 0
    %p137 = por %p135, %p136
    %s139 = sadd.s32 %s138, 1
    %p142 = scmp.eq.s32.totalorder %s15, 1
    %p143 = scmp.ne.s32.totalorder %s138, %s140
    %p144 = scmp.eq.s32.totalorder %s15, 0
    %p145 = por %p143, %p144
    %p146 = scmp.ne.s32.totalorder %s138, %s140
    %p147 = scmp.eq.s32.totalorder %s20, 1
    %p148 = por %p146, %p147
    %p149 = scmp.ne.s32.totalorder %s140, %s141
    %p150 = scmp.eq.s32.totalorder %s20, 0
    %p151 = por %p149, %p150
    %p152 = scmp.ne.s32.totalorder %s140, %s141
    %p153 = scmp.eq.s32.totalorder %s21, 1
    %p154 = por %p152, %p153
    %p156 = scmp.ne.s32.totalorder %s141, %s155
    %p157 = scmp.eq.s32.totalorder %s21, 0
    %p158 = por %p156, %p157
    %s160 = sadd.s32 %s159, 1
    %p163 = scmp.eq.s32.totalorder %s15, 1
    %p164 = scmp.ne.s32.totalorder %s159, %s161
    %p165 = scmp.eq.s32.totalorder %s15, 0
    %p166 = por %p164, %p165
    %p167 = scmp.ne.s32.totalorder %s159, %s161
    %p168 = scmp.eq.s32.totalorder %s20, 1
    %p169 = por %p167, %p168
    %p170 = scmp.ne.s32.totalorder %s161, %s162
    %p171 = scmp.eq.s32.totalorder %s20, 0
    %p172 = por %p170, %p171
    %p173 = scmp.ne.s32.totalorder %s161, %s162
    %p174 = scmp.eq.s32.totalorder %s21, 1
    %p175 = por %p173, %p174
    %p177 = scmp.ne.s32.totalorder %s162, %s176
    %p178 = scmp.eq.s32.totalorder %s21, 0
    %p179 = por %p177, %p178
    %s181 = sadd.s32 %s180, 1
    %p184 = scmp.eq.s32.totalorder %s15, 1
    %p185 = scmp.ne.s32.totalorder %s180, %s182
    %p186 = scmp.eq.s32.totalorder %s15, 0
    %p187 = por %p185, %p186
    %p188 = scmp.ne.s32.totalorder %s180, %s182
    %p189 = scmp.eq.s32.totalorder %s20, 1
    %p190 = por %p188, %p189
    %p191 = scmp.ne.s32.totalorder %s182, %s183
    %p192 = scmp.eq.s32.totalorder %s20, 0
    %p193 = por %p191, %p192
    %p194 = scmp.ne.s32.totalorder %s182, %s183
    %p195 = scmp.eq.s32.totalorder %s21, 1
    %p196 = por %p194, %p195
    %p198 = scmp.ne.s32.totalorder %s183, %s197
    %p199 = scmp.eq.s32.totalorder %s21, 0
    %p200 = por %p198, %p199
    %s202 = sadd.s32 %s201, 1
    %p205 = scmp.eq.s32.totalorder %s15, 1
    %p206 = scmp.ne.s32.totalorder %s201, %s203
    %p207 = scmp.eq.s32.totalorder %s15, 0
    %p208 = por %p206, %p207
    %p209 = scmp.ne.s32.totalorder %s201, %s203
    %p210 = scmp.eq.s32.totalorder %s20, 1
    %p211 = por %p209, %p210
    %p212 = scmp.ne.s32.totalorder %s203, %s204
    %p213 = scmp.eq.s32.totalorder %s20, 0
    %p214 = por %p212, %p213
    %p215 = scmp.ne.s32.totalorder %s203, %s204
    %p216 = scmp.eq.s32.totalorder %s21, 1
    %p217 = por %p215, %p216
    %p219 = scmp.ne.s32.totalorder %s204, %s218
    %p220 = scmp.eq.s32.totalorder %s21, 0
    %p221 = por %p219, %p220
    %s222 = ssub.s32 %s15, %s22
    %p223 = scmp.eq.s32.totalorder %s222, 0
    %s225 = sadd.s32 %s224, 1
    %s226 = scalar_select %p223, %s224, %s225
    %p229 = pneg %p223
    %p230 = scmp.eq.s32.totalorder %s15, 1
    %p231 = por %p229, %p230
    %p232 = scmp.ne.s32.totalorder %s224, %s227
    %p233 = scmp.eq.s32.totalorder %s15, 0
    %p234 = por %p232, %p233
    %p235 = scmp.ne.s32.totalorder %s224, %s227
    %p236 = scmp.eq.s32.totalorder %s20, 1
    %p237 = por %p235, %p236
    %p238 = scmp.ne.s32.totalorder %s227, %s228
    %p239 = scmp.eq.s32.totalorder %s20, 0
    %p240 = por %p238, %p239
    %p241 = scmp.ne.s32.totalorder %s227, %s228
    %p242 = scmp.eq.s32.totalorder %s21, 1
    %p243 = por %p241, %p242
    %p245 = scmp.ne.s32.totalorder %s228, %s244
    %p246 = scmp.eq.s32.totalorder %s21, 0
    %p247 = por %p245, %p246
    %p248 = scmp.le.s32.totalorder 1, %s15
    %p249 = scmp.lt.s32.totalorder %s15, 3
    %p250 = pnand %p248, %p249
    %p251 = pneg %p250
    // Predicated region
    $region9: #{up_transition_forward.1} parent=5 // pred_check
      _
    $region10: #{up_transition_forward.1} parent=5 // pred_check_branch
      %253 = sbr.rel (%p250) target = $region12
    $region11: #{up_transition_forward.1} parent=5 // pred_region
      %s254 = ssub.s32 %s15, 1
      // Predicated region
      $region13: #{up_transition_forward.1} parent=11 // pred_check
        %p255 = pneg %p88
      $region14: #{up_transition_forward.1} parent=11 // pred_check_branch
        %257 = sbr.rel (%p255) target = $region16
      $region15: #{up_transition_forward.1} parent=11 // pred_region
        _
      $region16: #{up_transition_forward.1} parent=11 // pred_fallthru
        _
      // Predicated region
      $region17: #{up_transition_forward.1} parent=11 // pred_check
        %p258 = pneg %p109
      $region18: #{up_transition_forward.1} parent=11 // pred_check_branch
        %260 = sbr.rel (%p258) target = $region20
      $region19: #{up_transition_forward.1} parent=11 // pred_region
        _
      $region20: #{up_transition_forward.1} parent=11 // pred_fallthru
        _
      // Predicated region
      $region21: #{up_transition_forward.1} parent=11 // pred_check
        %p261 = pneg %p130
      $region22: #{up_transition_forward.1} parent=11 // pred_check_branch
        %263 = sbr.rel (%p261) target = $region24
      $region23: #{up_transition_forward.1} parent=11 // pred_region
        _
      $region24: #{up_transition_forward.1} parent=11 // pred_fallthru
        _
      // Predicated region
      $region25: #{up_transition_forward.1} parent=11 // pred_check
        %p264 = pneg %p151
      $region26: #{up_transition_forward.1} parent=11 // pred_check_branch
        %266 = sbr.rel (%p264) target = $region28
      $region27: #{up_transition_forward.1} parent=11 // pred_region
        _
      $region28: #{up_transition_forward.1} parent=11 // pred_fallthru
        _
      // Predicated region
      $region29: #{up_transition_forward.1} parent=11 // pred_check
        %p267 = pneg %p172
      $region30: #{up_transition_forward.1} parent=11 // pred_check_branch
        %269 = sbr.rel (%p267) target = $region32
      $region31: #{up_transition_forward.1} parent=11 // pred_region
        _
      $region32: #{up_transition_forward.1} parent=11 // pred_fallthru
        _
      // Predicated region
      $region33: #{up_transition_forward.1} parent=11 // pred_check
        %p270 = pneg %p193
      $region34: #{up_transition_forward.1} parent=11 // pred_check_branch
        %272 = sbr.rel (%p270) target = $region36
      $region35: #{up_transition_forward.1} parent=11 // pred_region
        _
      $region36: #{up_transition_forward.1} parent=11 // pred_fallthru
        _
      // Predicated region
      $region37: #{up_transition_forward.1} parent=11 // pred_check
        %p273 = pneg %p214
      $region38: #{up_transition_forward.1} parent=11 // pred_check_branch
        %275 = sbr.rel (%p273) target = $region40
      $region39: #{up_transition_forward.1} parent=11 // pred_region
        _
      $region40: #{up_transition_forward.1} parent=11 // pred_fallthru
        _
    $region12: #{up_transition_forward.1} parent=5 // pred_fallthru
      _
    %p276 = scmp.lt.s32.totalorder %s15, 2
    // Predicated region
    $region41: #{up_transition_forward.1} parent=5 // pred_check
      %p277 = pneg %p276
    $region42: #{up_transition_forward.1} parent=5 // pred_check_branch
      %279 = sbr.rel (%p277) target = $region44
    $region43: #{up_transition_forward.1} parent=5 // pred_region
      // Predicated region
      $region45: #{up_transition_forward.1} parent=43 // pred_check
        %p280 = pneg %p35
      $region46: #{up_transition_forward.1} parent=43 // pred_check_branch
        %282 = sbr.rel (%p280) target = $region48
      $region47: #{up_transition_forward.1} parent=43 // pred_region
        %p283 = scmp.lt.s32.totalorder %s15, 1
        %s284 = scalar_select %p283, %s15, 1
        %s285 = smul.addr %s284, 2
        %s286 = smul.addr %s285, 8
        %s287 = scalar_lea.vmem %s0, %s286
      $region48: #{up_transition_forward.1} parent=43 // pred_fallthru
        _
      // Predicated region
      $region49: #{up_transition_forward.1} parent=43 // pred_check
        %p288 = pneg %p61
      $region50: #{up_transition_forward.1} parent=43 // pred_check_branch
        %290 = sbr.rel (%p288) target = $region52
      $region51: #{up_transition_forward.1} parent=43 // pred_region
        %p291 = scmp.lt.s32.totalorder %s15, 1
        %s292 = scalar_select %p291, %s15, 1
        %s293 = smul.addr %s292, 2
        %s294 = smul.addr %s293, 8
        %s295 = scalar_lea.vmem %s1, %s294
      $region52: #{up_transition_forward.1} parent=43 // pred_fallthru
        _
    $region44: #{up_transition_forward.1} parent=5 // pred_fallthru
      _
    %p296 = scmp.le.s32.totalorder 1, %s15
    %p297 = scmp.lt.s32.totalorder %s15, 3
    %p298 = pnand %p296, %p297
    %p299 = pneg %p298
    // Predicated region
    $region53: #{up_transition_forward.1} parent=5 // pred_check
      _
    $region54: #{up_transition_forward.1} parent=5 // pred_check_branch
      %301 = sbr.rel (%p298) target = $region56
    $region55: #{up_transition_forward.1} parent=5 // pred_region
      %s302 = ssub.s32 %s15, 1
      %p303 = scmp.lt.s32.totalorder %s20, 1
      %s304 = scalar_select %p303, %s20, 1
      %s305 = smul.addr %s304, 2
      %s306 = smul.addr %s305, 8
      %s307 = scalar_lea.vmem %s0, %s306
      %p308 = pneg %p41
      %p309 = pneg %p38
      %p310 = scmp.lt.s32.totalorder %s20, 1
      %s311 = scalar_select %p310, %s20, 1
      %s312 = smul.addr %s311, 2
      %s313 = smul.addr %s312, 8
      %s314 = scalar_lea.vmem %s1, %s313
      %p315 = pneg %p67
      %p316 = pneg %p64
      %p317 = pneg %p88
      %p318 = pneg %p85
      %p319 = pneg %p109
      %p320 = pneg %p106
      %p321 = pneg %p130
      %p322 = pneg %p127
      %p323 = pneg %p151
      %p324 = pneg %p148
      %p325 = pneg %p172
      %p326 = pneg %p169
      %p327 = pneg %p193
      %p328 = pneg %p190
      %p329 = pneg %p214
      %p330 = pneg %p211
      %p331 = pneg %p240
      %p332 = pneg %p237
      %p333 = scmp.lt.s32.totalorder %s20, 1
      %s334 = scalar_select %p333, %s20, 1
      %s335 = smul.addr %s334, 2
      %s336 = smul.addr %s335, 8
      %s337 = scalar_lea.vmem %s9, %s336
      %p338 = scmp.lt.s32.totalorder %s20, 1
      %s339 = scalar_select %p338, %s20, 1
      %s340 = smul.addr %s339, 2
      %s341 = smul.addr %s340, 8
      %s342 = scalar_lea.vmem %s0, %s341
      %p343 = scmp.lt.s32.totalorder %s20, 1
      %s344 = scalar_select %p343, %s20, 1
      %s345 = smul.addr %s344, 2
      %s346 = smul.addr %s345, 8
      %s347 = scalar_lea.vmem %s1, %s346
      %p348 = scmp.lt.s32.totalorder %s20, 1
      %s349 = scalar_select %p348, %s20, 1
      %s350 = smul.addr %s349, 2
      %s351 = smul.addr %s350, 8
      %s352 = scalar_lea.vmem %s9, %s351
      %v354 = vld [vmem:[%s8] sm:$0xff]
      %v355 = vld [vmem:[%s8 + $0x8] sm:$0xff]
      %v356 = vld [vmem:[%s8 + $0x10] sm:$0x1]
      %v357 = vld [vmem:[%s8 + $0x18] sm:$0x1]
      %v358 = vld [vmem:[%s342] sm:$0xff]
      %v359 = vld [vmem:[%s342 + $0x8] sm:$0xff]
      %v360 = vld [vmem:[%s347] sm:$0xff]
      %v361 = vld [vmem:[%s347 + $0x8] sm:$0xff]
      %v362 = vlaneseq
      %v363 = vshrl.u32 %v362, 7
      %v364 = vsub.s32 0, %v363
      %v365 = vrot.slane %v354, %v364
      %v366 = vlaneseq
      %v367 = vshrl.u32 %v366, 7
      %v368 = vsub.s32 0, %v367
      %v369 = vrot.slane %v355, %v368
      %372 = vrot.lane.b32.xlu0 %v365, 111
      %v373 = vpop.permute.xlu0 %372
      %374 = vrot.lane.b32.xlu0 %v369, 111
      %v375 = vpop.permute.xlu0 %374
      %vm376 = vcmask 908288
      %v377 = vsel %vm376, %v373, %v375
      %v381 = vmul.f32 %v359, %v373
      %v382 = vmul.f32 %v358, %v377
      %v383 = vmul.f32 %v359, %v375
      %v384 = vmul.f32 %v361, %v373
      %v385 = vmul.f32 %v360, %v377
      %v386 = vmul.f32 %v361, %v375
      %v387 = vpack.c.bf16 %v384, %v381
      %v388 = vpack.c.bf16 %v385, %v382
      %v389 = vpack.c.bf16 %v386, %v383
      %393 = vrot.lane.b32.xlu0 %v387, 17
      %v394 = vpop.permute.xlu0 %393
      %395 = vrot.lane.b32.xlu0 %v388, 17
      %v396 = vpop.permute.xlu0 %395
      %397 = vrot.lane.b32.xlu0 %v389, 17
      %v398 = vpop.permute.xlu0 %397
      %vm399 = vcmask 138240
      %v400 = vsel %vm399, %v394, %v396
      %v401 = vsel %vm399, %v396, %v398
      %404 = vst [vmem:[#allocation2] sm:$0xff] %v400
      %405 = vst [vmem:[#allocation2 + $0x8] sm:$0xff] %v401
      %v406 = vlaneseq
      %v407 = vshrl.u32 %v406, 7
      %v408 = vsub.s32 1, %v407
      %v409 = vrot.slane %v354, %v408
      %v410 = vlaneseq
      %v411 = vshrl.u32 %v410, 7
      %v412 = vsub.s32 1, %v411
      %v413 = vrot.slane %v355, %v412
      %416 = vrot.lane.b32.xlu0 %v409, 112
      %v417 = vpop.permute.xlu0 %416
      %418 = vrot.lane.b32.xlu0 %v413, 112
      %v419 = vpop.permute.xlu0 %418
      %vm420 = vcmask 916480
      %v421 = vsel %vm420, %v417, %v419
      %v425 = vmul.f32 %v359, %v417
      %v426 = vmul.f32 %v358, %v421
      %v427 = vmul.f32 %v359, %v419
      %v428 = vmul.f32 %v361, %v417
      %v429 = vmul.f32 %v360, %v421
      %v430 = vmul.f32 %v361, %v419
      %v431 = vpack.c.bf16 %v428, %v425
      %v432 = vpack.c.bf16 %v429, %v426
      %v433 = vpack.c.bf16 %v430, %v427
      %437 = vrot.lane.b32.xlu0 %v431, 16
      %v438 = vpop.permute.xlu0 %437
      %439 = vrot.lane.b32.xlu0 %v432, 16
      %v440 = vpop.permute.xlu0 %439
      %441 = vrot.lane.b32.xlu0 %v433, 16
      %v442 = vpop.permute.xlu0 %441
      %vm443 = vcmask 130048
      %v444 = vsel %vm443, %v438, %v440
      %v445 = vsel %vm443, %v440, %v442
      %448 = vst [vmem:[#allocation2 + $0x10] sm:$0xff] %v444
      %449 = vst [vmem:[#allocation2 + $0x18] sm:$0xff] %v445
      %v450 = vlaneseq
      %v451 = vshrl.u32 %v450, 7
      %v452 = vsub.s32 2, %v451
      %v453 = vrot.slane %v354, %v452
      %v454 = vlaneseq
      %v455 = vshrl.u32 %v454, 7
      %v456 = vsub.s32 2, %v455
      %v457 = vrot.slane %v355, %v456
      %460 = vrot.lane.b32.xlu0 %v453, 113
      %v461 = vpop.permute.xlu0 %460
      %462 = vrot.lane.b32.xlu0 %v457, 113
      %v463 = vpop.permute.xlu0 %462
      %vm464 = vcmask 924672
      %v465 = vsel %vm464, %v461, %v463
      %v469 = vmul.f32 %v359, %v461
      %v470 = vmul.f32 %v358, %v465
      %v471 = vmul.f32 %v359, %v463
      %v472 = vmul.f32 %v361, %v461
      %v473 = vmul.f32 %v360, %v465
      %v474 = vmul.f32 %v361, %v463
      %v475 = vpack.c.bf16 %v472, %v469
      %v476 = vpack.c.bf16 %v473, %v470
      %v477 = vpack.c.bf16 %v474, %v471
      %481 = vrot.lane.b32.xlu0 %v475, 15
      %v482 = vpop.permute.xlu0 %481
      %483 = vrot.lane.b32.xlu0 %v476, 15
      %v484 = vpop.permute.xlu0 %483
      %485 = vrot.lane.b32.xlu0 %v477, 15
      %v486 = vpop.permute.xlu0 %485
      %vm487 = vcmask 121856
      %v488 = vsel %vm487, %v482, %v484
      %v489 = vsel %vm487, %v484, %v486
      %492 = vst [vmem:[#allocation2 + $0x20] sm:$0xff] %v488
      %493 = vst [vmem:[#allocation2 + $0x28] sm:$0xff] %v489
      %v494 = vlaneseq
      %v495 = vshrl.u32 %v494, 7
      %v496 = vsub.s32 3, %v495
      %v497 = vrot.slane %v354, %v496
      %v498 = vlaneseq
      %v499 = vshrl.u32 %v498, 7
      %v500 = vsub.s32 3, %v499
      %v501 = vrot.slane %v355, %v500
      %504 = vrot.lane.b32.xlu0 %v497, 127
      %v505 = vpop.permute.xlu0 %504
      %506 = vrot.lane.b32.xlu0 %v501, 127
      %v507 = vpop.permute.xlu0 %506
      %vm508 = vcmask 1039360
      %v509 = vsel %vm508, %v505, %v507
      %v513 = vmul.f32 %v359, %v505
      %v514 = vmul.f32 %v358, %v509
      %v515 = vmul.f32 %v359, %v507
      %v516 = vmul.f32 %v361, %v505
      %v517 = vmul.f32 %v360, %v509
      %v518 = vmul.f32 %v361, %v507
      %v519 = vpack.c.bf16 %v516, %v513
      %v520 = vpack.c.bf16 %v517, %v514
      %v521 = vpack.c.bf16 %v518, %v515
      %525 = vrot.lane.b32.xlu0 %v519, 1
      %v526 = vpop.permute.xlu0 %525
      %527 = vrot.lane.b32.xlu0 %v520, 1
      %v528 = vpop.permute.xlu0 %527
      %529 = vrot.lane.b32.xlu0 %v521, 1
      %v530 = vpop.permute.xlu0 %529
      %vm531 = vcmask 7168
      %v532 = vsel %vm531, %v526, %v528
      %v533 = vsel %vm531, %v528, %v530
      %536 = vst [vmem:[#allocation2 + $0x30] sm:$0xff] %v532
      %537 = vst [vmem:[#allocation2 + $0x38] sm:$0xff] %v533
      %v538 = vlaneseq
      %v539 = vshrl.u32 %v538, 7
      %v540 = vsub.s32 4, %v539
      %v541 = vrot.slane %v354, %v540
      %v542 = vlaneseq
      %v543 = vshrl.u32 %v542, 7
      %v544 = vsub.s32 4, %v543
      %v545 = vrot.slane %v355, %v544
      %v546 = vmul.f32 %v358, %v541
      %v547 = vmul.f32 %v359, %v545
      %v548 = vmul.f32 %v360, %v541
      %v549 = vmul.f32 %v361, %v545
      %v550 = vpack.c.bf16 %v548, %v546
      %v551 = vpack.c.bf16 %v549, %v547
      %552 = vst [vmem:[#allocation2 + $0x40] sm:$0xff] %v550
      %553 = vst [vmem:[#allocation2 + $0x48] sm:$0xff] %v551
      %v554 = vlaneseq
      %v555 = vshrl.u32 %v554, 7
      %v556 = vsub.s32 5, %v555
      %v557 = vrot.slane %v354, %v556
      %v558 = vlaneseq
      %v559 = vshrl.u32 %v558, 7
      %v560 = vsub.s32 5, %v559
      %v561 = vrot.slane %v355, %v560
      %564 = vrot.lane.b32.xlu0 %v557, 1
      %v565 = vpop.permute.xlu0 %564
      %566 = vrot.lane.b32.xlu0 %v561, 1
      %v567 = vpop.permute.xlu0 %566
      %vm568 = vcmask 7168
      %v569 = vsel %vm568, %v565, %v567
      %v573 = vmul.f32 %v358, %v565
      %v574 = vmul.f32 %v359, %v569
      %v575 = vmul.f32 %v358, %v567
      %v576 = vmul.f32 %v360, %v565
      %v577 = vmul.f32 %v361, %v569
      %v578 = vmul.f32 %v360, %v567
      %v579 = vpack.c.bf16 %v576, %v573
      %v580 = vpack.c.bf16 %v577, %v574
      %v581 = vpack.c.bf16 %v578, %v575
      %585 = vrot.lane.b32.xlu0 %v579, 127
      %v586 = vpop.permute.xlu0 %585
      %587 = vrot.lane.b32.xlu0 %v580, 127
      %v588 = vpop.permute.xlu0 %587
      %589 = vrot.lane.b32.xlu0 %v581, 127
      %v590 = vpop.permute.xlu0 %589
      %vm591 = vcmask 1039360
      %v592 = vsel %vm591, %v586, %v588
      %v593 = vsel %vm591, %v588, %v590
      %596 = vst [vmem:[#allocation2 + $0x50] sm:$0xff] %v592
      %597 = vst [vmem:[#allocation2 + $0x58] sm:$0xff] %v593
      %v598 = vlaneseq
      %v599 = vshrl.u32 %v598, 7
      %v600 = vsub.s32 6, %v599
      %v601 = vrot.slane %v354, %v600
      %v602 = vlaneseq
      %v603 = vshrl.u32 %v602, 7
      %v604 = vsub.s32 6, %v603
      %v605 = vrot.slane %v355, %v604
      %608 = vrot.lane.b32.xlu0 %v601, 15
      %v609 = vpop.permute.xlu0 %608
      %610 = vrot.lane.b32.xlu0 %v605, 15
      %v611 = vpop.permute.xlu0 %610
      %vm612 = vcmask 121856
      %v613 = vsel %vm612, %v609, %v611
      %v617 = vmul.f32 %v358, %v609
      %v618 = vmul.f32 %v359, %v613
      %v619 = vmul.f32 %v358, %v611
      %v620 = vmul.f32 %v360, %v609
      %v621 = vmul.f32 %v361, %v613
      %v622 = vmul.f32 %v360, %v611
      %v623 = vpack.c.bf16 %v620, %v617
      %v624 = vpack.c.bf16 %v621, %v618
      %v625 = vpack.c.bf16 %v622, %v619
      %629 = vrot.lane.b32.xlu0 %v623, 113
      %v630 = vpop.permute.xlu0 %629
      %631 = vrot.lane.b32.xlu0 %v624, 113
      %v632 = vpop.permute.xlu0 %631
      %633 = vrot.lane.b32.xlu0 %v625, 113
      %v634 = vpop.permute.xlu0 %633
      %vm635 = vcmask 924672
      %v636 = vsel %vm635, %v630, %v632
      %v637 = vsel %vm635, %v632, %v634
      %640 = vst [vmem:[#allocation2 + $0x60] sm:$0xff] %v636
      %641 = vst [vmem:[#allocation2 + $0x68] sm:$0xff] %v637
      %v642 = vlaneseq
      %v643 = vshrl.u32 %v642, 7
      %v644 = vsub.s32 7, %v643
      %v645 = vrot.slane %v354, %v644
      %v646 = vlaneseq
      %v647 = vshrl.u32 %v646, 7
      %v648 = vsub.s32 7, %v647
      %v649 = vrot.slane %v355, %v648
      %652 = vrot.lane.b32.xlu0 %v645, 16
      %v653 = vpop.permute.xlu0 %652
      %654 = vrot.lane.b32.xlu0 %v649, 16
      %v655 = vpop.permute.xlu0 %654
      %vm656 = vcmask 130048
      %v657 = vsel %vm656, %v653, %v655
      %v661 = vmul.f32 %v358, %v653
      %v662 = vmul.f32 %v359, %v657
      %v663 = vmul.f32 %v358, %v655
      %v664 = vmul.f32 %v360, %v653
      %v665 = vmul.f32 %v361, %v657
      %v666 = vmul.f32 %v360, %v655
      %v667 = vpack.c.bf16 %v664, %v661
      %v668 = vpack.c.bf16 %v665, %v662
      %v669 = vpack.c.bf16 %v666, %v663
      %673 = vrot.lane.b32.xlu0 %v667, 112
      %v674 = vpop.permute.xlu0 %673
      %675 = vrot.lane.b32.xlu0 %v668, 112
      %v676 = vpop.permute.xlu0 %675
      %677 = vrot.lane.b32.xlu0 %v669, 112
      %v678 = vpop.permute.xlu0 %677
      %vm679 = vcmask 916480
      %v680 = vsel %vm679, %v674, %v676
      %v681 = vsel %vm679, %v676, %v678
      %684 = vst [vmem:[#allocation2 + $0x70] sm:$0xff] %v680
      %685 = vst [vmem:[#allocation2 + $0x78] sm:$0xff] %v681
      %v686 = vlaneseq
      %v687 = vshrl.u32 %v686, 7
      %v688 = vsub.s32 0, %v687
      %v689 = vrot.slane %v356, %v688
      %v690 = vlaneseq
      %v691 = vshrl.u32 %v690, 7
      %v692 = vsub.s32 0, %v691
      %v693 = vrot.slane %v357, %v692
      %696 = vrot.lane.b32.xlu0 %v689, 17
      %v697 = vpop.permute.xlu0 %696
      %698 = vrot.lane.b32.xlu0 %v693, 17
      %v699 = vpop.permute.xlu0 %698
      %vm700 = vcmask 138240
      %v701 = vsel %vm700, %v697, %v699
      %v705 = vmul.f32 %v358, %v697
      %v706 = vmul.f32 %v359, %v701
      %v707 = vmul.f32 %v358, %v699
      %v708 = vmul.f32 %v360, %v697
      %v709 = vmul.f32 %v361, %v701
      %v710 = vmul.f32 %v360, %v699
      %v711 = vpack.c.bf16 %v708, %v705
      %v712 = vpack.c.bf16 %v709, %v706
      %v713 = vpack.c.bf16 %v710, %v707
      %717 = vrot.lane.b32.xlu0 %v711, 111
      %v718 = vpop.permute.xlu0 %717
      %719 = vrot.lane.b32.xlu0 %v712, 111
      %v720 = vpop.permute.xlu0 %719
      %721 = vrot.lane.b32.xlu0 %v713, 111
      %v722 = vpop.permute.xlu0 %721
      %vm723 = vcmask 908288
      %v724 = vsel %vm723, %v718, %v720
      %v725 = vsel %vm723, %v720, %v722
      %728 = vst [vmem:[#allocation2 + $0x80] sm:$0xff] %v724
      %729 = vst [vmem:[#allocation2 + $0x88] sm:$0xff] %v725
      %v730 = vld [vmem:[%s2] sm:$0xff]
      %v731 = vld [vmem:[%s2 + $0x8] sm:$0xff]
      %v732 = vld [vmem:[#allocation2] sm:$0xff]
      %v733 = vld [vmem:[#allocation2 + $0x8] sm:$0xff]
      %v734 = vld [vmem:[#allocation2 + $0x10] sm:$0xff]
      %v735 = vld [vmem:[#allocation2 + $0x18] sm:$0xff]
      %v736 = vld [vmem:[#allocation2 + $0x20] sm:$0xff]
      %v737 = vld [vmem:[#allocation2 + $0x28] sm:$0xff]
      %v738 = vld [vmem:[#allocation2 + $0x30] sm:$0xff]
      %v739 = vld [vmem:[#allocation2 + $0x38] sm:$0xff]
      %v740 = vld [vmem:[#allocation2 + $0x40] sm:$0xff]
      %v741 = vld [vmem:[#allocation2 + $0x48] sm:$0xff]
      %v742 = vld [vmem:[#allocation2 + $0x50] sm:$0xff]
      %v743 = vld [vmem:[#allocation2 + $0x58] sm:$0xff]
      %v744 = vld [vmem:[#allocation2 + $0x60] sm:$0xff]
      %v745 = vld [vmem:[#allocation2 + $0x68] sm:$0xff]
      %v746 = vld [vmem:[#allocation2 + $0x70] sm:$0xff]
      %v747 = vld [vmem:[#allocation2 + $0x78] sm:$0xff]
      %v748 = vld [vmem:[#allocation2 + $0x80] sm:$0xff]
      %v749 = vld [vmem:[#allocation2 + $0x88] sm:$0xff]
      %v752 = vunpack.c.l.b16 %v730
      %v753 = vunpack.c.h.b16 %v730
      %v754 = vunpack.c.l.b16 %v731
      %v755 = vunpack.c.h.b16 %v731
      %v756 = vpack.c.b16 %v754, %v752
      %v757 = vpack.c.b16 %v755, %v753
      %v760 = vsel %vm656, %v757, 0
      %762 = vmatprep.subr.bf16.mxu0 %v733
      %763 = vmatpush1.bf16.msra.mxu0 %v732
      %764 = vmatprep.subr.bf16.mxu0 %v735
      %765 = vmatpush1.bf16.msra.mxu0 %v734
      %766 = vmatprep.subr.bf16.mxu0 %v737
      %767 = vmatpush1.bf16.msra.mxu0 %v736
      %768 = vmatprep.subr.bf16.mxu0 %v739
      %769 = vmatpush1.bf16.msra.mxu0 %v738
      %770 = vmatprep.subr.bf16.mxu0 %v741
      %771 = vmatpush1.bf16.msra.mxu0 %v740
      %772 = vmatprep.subr.bf16.mxu0 %v743
      %773 = vmatpush1.bf16.msra.mxu0 %v742
      %774 = vmatprep.subr.bf16.mxu0 %v745
      %775 = vmatpush1.bf16.msra.mxu0 %v744
      %776 = vmatprep.subr.bf16.mxu0 %v747
      %777 = vmatpush1.bf16.msra.mxu0 %v746
      %778 = vmatprep.subr.bf16.mxu0 %v749
      %779 = vmatpush1.bf16.msra.mxu0 %v748
      %780 = vmatprep.subr.bf16.mxu0 0
      %781 = vmatpush1.bf16.msra.mxu0 0
      %782 = vmatprep.subr.bf16.mxu0 0
      %783 = vmatpush1.bf16.msra.mxu0 0
      %784 = vmatprep.subr.bf16.mxu0 0
      %785 = vmatpush1.bf16.msra.mxu0 0
      %786 = vmatprep.subr.bf16.mxu0 0
      %787 = vmatpush1.bf16.msra.mxu0 0
      %788 = vmatprep.subr.bf16.mxu0 0
      %789 = vmatpush1.bf16.msra.mxu0 0
      %790 = vmatprep.subr.bf16.mxu0 0
      %791 = vmatpush1.bf16.msra.mxu0 0
      %792 = vmatprep.subr.bf16.mxu0 0
      %793 = vmatpush1.bf16.msra.mxu0 0
      %794 = vmatprep.mubr.bf16.mxu0 %v760
      %795 = vmatmul.mubr.bf16.gmra.mrb[0].mxu0 %v756
      %v796 = vpop.f32.mrb[0].mxu0
      %v797 = vadd.f32 0.0, %v796
      %v798 = vpop.f32.mrb[0].mxu0
      %v799 = vadd.f32 0.0, %v798
      %v800 = vpop.f32.mrb[0].mxu0
      %v801 = vadd.f32 0.0, %v800
      %v802 = vpop.f32.mrb[0].mxu0
      %v803 = vadd.f32 0.0, %v802
      %804 = vdwg.mxu0
      %v805 = vld [vmem:[%s3] sm:$0xff]
      %v806 = vld [vmem:[%s3 + $0x8] sm:$0xff]
      %808 = vset.pattern.permute.xlu0 0
      %809 = vperm.xlu0 %808, %v805
      %v810 = vpop.permute.xlu0 %809
      %813 = vset.pattern.permute.xlu0 0
      %814 = vperm.xlu0 %813, %v806
      %v815 = vpop.permute.xlu0 %814
      %v817 = vmul.f32 %v797, %v810
      %v818 = vmul.f32 %v799, %v810
      %v819 = vmul.f32 %v801, %v815
      %v820 = vmul.f32 %v803, %v815
      %v821 = vld [vmem:[%s4] sm:$0xff]
      %v822 = vld [vmem:[%s4 + $0x8] sm:$0xff]
      %824 = vset.pattern.permute.xlu0 0
      %825 = vperm.xlu0 %824, %v821
      %v826 = vpop.permute.xlu0 %825
      %829 = vset.pattern.permute.xlu0 0
      %830 = vperm.xlu0 %829, %v822
      %v831 = vpop.permute.xlu0 %830
      %v833 = vadd.f32 %v817, %v826
      %v834 = vadd.f32 %v818, %v826
      %v835 = vadd.f32 %v819, %v831
      %v836 = vadd.f32 %v820, %v831
      %vm837 = vcmp.gt.f32.partialorder %v833, 0.0
      %vm838 = vcmp.gt.f32.partialorder %v834, 0.0
      %vm839 = vcmp.gt.f32.partialorder %v835, 0.0
      %vm840 = vcmp.gt.f32.partialorder %v836, 0.0
      %v841 = vmul.f32 %v833, 0.1
      %v842 = vmul.f32 %v834, 0.1
      %v843 = vmul.f32 %v835, 0.1
      %v844 = vmul.f32 %v836, 0.1
      %v845 = vsel %vm837, %v833, %v841
      %v846 = vsel %vm838, %v834, %v842
      %v847 = vsel %vm839, %v835, %v843
      %v848 = vsel %vm840, %v836, %v844
      %v849 = vmul.f32 %v846, %v373
      %v850 = vmul.f32 %v845, %v377
      %v851 = vmul.f32 %v846, %v375
      %v852 = vmul.f32 %v848, %v373
      %v853 = vmul.f32 %v847, %v377
      %v854 = vmul.f32 %v848, %v375
      %v855 = vpack.c.bf16 %v852, %v849
      %v856 = vpack.c.bf16 %v853, %v850
      %v857 = vpack.c.bf16 %v854, %v851
      %861 = vrot.lane.b32.xlu0 %v855, 17
      %v862 = vpop.permute.xlu0 %861
      %863 = vrot.lane.b32.xlu0 %v856, 17
      %v864 = vpop.permute.xlu0 %863
      %865 = vrot.lane.b32.xlu0 %v857, 17
      %v866 = vpop.permute.xlu0 %865
      %v867 = vsel %vm399, %v862, %v864
      %v868 = vsel %vm399, %v864, %v866
      %871 = vst [vmem:[#allocation2] sm:$0xff] %v867
      %872 = vst [vmem:[#allocation2 + $0x8] sm:$0xff] %v868
      %v873 = vmul.f32 %v846, %v417
      %v874 = vmul.f32 %v845, %v421
      %v875 = vmul.f32 %v846, %v419
      %v876 = vmul.f32 %v848, %v417
      %v877 = vmul.f32 %v847, %v421
      %v878 = vmul.f32 %v848, %v419
      %v879 = vpack.c.bf16 %v876, %v873
      %v880 = vpack.c.bf16 %v877, %v874
      %v881 = vpack.c.bf16 %v878, %v875
      %885 = vrot.lane.b32.xlu0 %v879, 16
      %v886 = vpop.permute.xlu0 %885
      %887 = vrot.lane.b32.xlu0 %v880, 16
      %v888 = vpop.permute.xlu0 %887
      %889 = vrot.lane.b32.xlu0 %v881, 16
      %v890 = vpop.permute.xlu0 %889
      %v891 = vsel %vm443, %v886, %v888
      %v892 = vsel %vm443, %v888, %v890
      %895 = vst [vmem:[#allocation2 + $0x10] sm:$0xff] %v891
      %896 = vst [vmem:[#allocation2 + $0x18] sm:$0xff] %v892
      %v897 = vmul.f32 %v846, %v461
      %v898 = vmul.f32 %v845, %v465
      %v899 = vmul.f32 %v846, %v463
      %v900 = vmul.f32 %v848, %v461
      %v901 = vmul.f32 %v847, %v465
      %v902 = vmul.f32 %v848, %v463
      %v903 = vpack.c.bf16 %v900, %v897
      %v904 = vpack.c.bf16 %v901, %v898
      %v905 = vpack.c.bf16 %v902, %v899
      %909 = vrot.lane.b32.xlu0 %v903, 15
      %v910 = vpop.permute.xlu0 %909
      %911 = vrot.lane.b32.xlu0 %v904, 15
      %v912 = vpop.permute.xlu0 %911
      %913 = vrot.lane.b32.xlu0 %v905, 15
      %v914 = vpop.permute.xlu0 %913
      %v915 = vsel %vm487, %v910, %v912
      %v916 = vsel %vm487, %v912, %v914
      %919 = vst [vmem:[#allocation2 + $0x20] sm:$0xff] %v915
      %920 = vst [vmem:[#allocation2 + $0x28] sm:$0xff] %v916
      %v921 = vmul.f32 %v846, %v505
      %v922 = vmul.f32 %v845, %v509
      %v923 = vmul.f32 %v846, %v507
      %v924 = vmul.f32 %v848, %v505
      %v925 = vmul.f32 %v847, %v509
      %v926 = vmul.f32 %v848, %v507
      %v927 = vpack.c.bf16 %v924, %v921
      %v928 = vpack.c.bf16 %v925, %v922
      %v929 = vpack.c.bf16 %v926, %v923
      %933 = vrot.lane.b32.xlu0 %v927, 1
      %v934 = vpop.permute.xlu0 %933
      %935 = vrot.lane.b32.xlu0 %v928, 1
      %v936 = vpop.permute.xlu0 %935
      %937 = vrot.lane.b32.xlu0 %v929, 1
      %v938 = vpop.permute.xlu0 %937
      %v939 = vsel %vm531, %v934, %v936
      %v940 = vsel %vm531, %v936, %v938
      %943 = vst [vmem:[#allocation2 + $0x30] sm:$0xff] %v939
      %944 = vst [vmem:[#allocation2 + $0x38] sm:$0xff] %v940
      %v945 = vmul.f32 %v845, %v541
      %v946 = vmul.f32 %v846, %v545
      %v947 = vmul.f32 %v847, %v541
      %v948 = vmul.f32 %v848, %v545
      %v949 = vpack.c.bf16 %v947, %v945
      %v950 = vpack.c.bf16 %v948, %v946
      %951 = vst [vmem:[#allocation2 + $0x40] sm:$0xff] %v949
      %952 = vst [vmem:[#allocation2 + $0x48] sm:$0xff] %v950
      %v953 = vmul.f32 %v845, %v565
      %v954 = vmul.f32 %v846, %v569
      %v955 = vmul.f32 %v845, %v567
      %v956 = vmul.f32 %v847, %v565
      %v957 = vmul.f32 %v848, %v569
      %v958 = vmul.f32 %v847, %v567
      %v959 = vpack.c.bf16 %v956, %v953
      %v960 = vpack.c.bf16 %v957, %v954
      %v961 = vpack.c.bf16 %v958, %v955
      %965 = vrot.lane.b32.xlu0 %v959, 127
      %v966 = vpop.permute.xlu0 %965
      %967 = vrot.lane.b32.xlu0 %v960, 127
      %v968 = vpop.permute.xlu0 %967
      %969 = vrot.lane.b32.xlu0 %v961, 127
      %v970 = vpop.permute.xlu0 %969
      %v971 = vsel %vm591, %v966, %v968
      %v972 = vsel %vm591, %v968, %v970
      %975 = vst [vmem:[#allocation2 + $0x50] sm:$0xff] %v971
      %976 = vst [vmem:[#allocation2 + $0x58] sm:$0xff] %v972
      %v977 = vmul.f32 %v845, %v609
      %v978 = vmul.f32 %v846, %v613
      %v979 = vmul.f32 %v845, %v611
      %v980 = vmul.f32 %v847, %v609
      %v981 = vmul.f32 %v848, %v613
      %v982 = vmul.f32 %v847, %v611
      %v983 = vpack.c.bf16 %v980, %v977
      %v984 = vpack.c.bf16 %v981, %v978
      %v985 = vpack.c.bf16 %v982, %v979
      %989 = vrot.lane.b32.xlu0 %v983, 113
      %v990 = vpop.permute.xlu0 %989
      %991 = vrot.lane.b32.xlu0 %v984, 113
      %v992 = vpop.permute.xlu0 %991
      %993 = vrot.lane.b32.xlu0 %v985, 113
      %v994 = vpop.permute.xlu0 %993
      %v995 = vsel %vm635, %v990, %v992
      %v996 = vsel %vm635, %v992, %v994
      %999 = vst [vmem:[#allocation2 + $0x60] sm:$0xff] %v995
      %1000 = vst [vmem:[#allocation2 + $0x68] sm:$0xff] %v996
      %v1001 = vmul.f32 %v845, %v653
      %v1002 = vmul.f32 %v846, %v657
      %v1003 = vmul.f32 %v845, %v655
      %v1004 = vmul.f32 %v847, %v653
      %v1005 = vmul.f32 %v848, %v657
      %v1006 = vmul.f32 %v847, %v655
      %v1007 = vpack.c.bf16 %v1004, %v1001
      %v1008 = vpack.c.bf16 %v1005, %v1002
      %v1009 = vpack.c.bf16 %v1006, %v1003
      %1013 = vrot.lane.b32.xlu0 %v1007, 112
      %v1014 = vpop.permute.xlu0 %1013
      %1015 = vrot.lane.b32.xlu0 %v1008, 112
      %v1016 = vpop.permute.xlu0 %1015
      %1017 = vrot.lane.b32.xlu0 %v1009, 112
      %v1018 = vpop.permute.xlu0 %1017
      %v1019 = vsel %vm679, %v1014, %v1016
      %v1020 = vsel %vm679, %v1016, %v1018
      %1023 = vst [vmem:[#allocation2 + $0x70] sm:$0xff] %v1019
      %1024 = vst [vmem:[#allocation2 + $0x78] sm:$0xff] %v1020
      %v1025 = vmul.f32 %v845, %v697
      %v1026 = vmul.f32 %v846, %v701
      %v1027 = vmul.f32 %v845, %v699
      %v1028 = vmul.f32 %v847, %v697
      %v1029 = vmul.f32 %v848, %v701
      %v1030 = vmul.f32 %v847, %v699
      %v1031 = vpack.c.bf16 %v1028, %v1025
      %v1032 = vpack.c.bf16 %v1029, %v1026
      %v1033 = vpack.c.bf16 %v1030, %v1027
      %1037 = vrot.lane.b32.xlu0 %v1031, 111
      %v1038 = vpop.permute.xlu0 %1037
      %1039 = vrot.lane.b32.xlu0 %v1032, 111
      %v1040 = vpop.permute.xlu0 %1039
      %1041 = vrot.lane.b32.xlu0 %v1033, 111
      %v1042 = vpop.permute.xlu0 %1041
      %v1043 = vsel %vm723, %v1038, %v1040
      %v1044 = vsel %vm723, %v1040, %v1042
      %1047 = vst [vmem:[#allocation2 + $0x80] sm:$0xff] %v1043
      %1048 = vst [vmem:[#allocation2 + $0x88] sm:$0xff] %v1044
      %v1049 = vld [vmem:[%s5] sm:$0xff]
      %v1050 = vld [vmem:[#allocation2] sm:$0xff]
      %v1051 = vld [vmem:[#allocation2 + $0x8] sm:$0xff]
      %v1052 = vld [vmem:[#allocation2 + $0x10] sm:$0xff]
      %v1053 = vld [vmem:[#allocation2 + $0x18] sm:$0xff]
      %v1054 = vld [vmem:[#allocation2 + $0x20] sm:$0xff]
      %v1055 = vld [vmem:[#allocation2 + $0x28] sm:$0xff]
      %v1056 = vld [vmem:[#allocation2 + $0x30] sm:$0xff]
      %v1057 = vld [vmem:[#allocation2 + $0x38] sm:$0xff]
      %v1058 = vld [vmem:[#allocation2 + $0x40] sm:$0xff]
      %v1059 = vld [vmem:[#allocation2 + $0x48] sm:$0xff]
      %v1060 = vld [vmem:[#allocation2 + $0x50] sm:$0xff]
      %v1061 = vld [vmem:[#allocation2 + $0x58] sm:$0xff]
      %v1062 = vld [vmem:[#allocation2 + $0x60] sm:$0xff]
      %v1063 = vld [vmem:[#allocation2 + $0x68] sm:$0xff]
      %v1064 = vld [vmem:[#allocation2 + $0x70] sm:$0xff]
      %v1065 = vld [vmem:[#allocation2 + $0x78] sm:$0xff]
      %v1066 = vld [vmem:[#allocation2 + $0x80] sm:$0xff]
      %v1067 = vld [vmem:[#allocation2 + $0x88] sm:$0xff]
      %v1069 = vunpack.c.l.b16 %v1049
      %v1070 = vunpack.c.h.b16 %v1049
      %v1071 = vpack.c.b16 %v1069, %v1069
      %v1072 = vpack.c.b16 %v1070, %v1070
      %v1075 = vsel %vm656, %v1072, 0
      %1077 = vmatprep.subr.bf16.mxu0 %v1051
      %1078 = vmatpush1.bf16.msra.mxu0 %v1050
      %1079 = vmatprep.subr.bf16.mxu0 %v1053
      %1080 = vmatpush1.bf16.msra.mxu0 %v1052
      %1081 = vmatprep.subr.bf16.mxu0 %v1055
      %1082 = vmatpush1.bf16.msra.mxu0 %v1054
      %1083 = vmatprep.subr.bf16.mxu0 %v1057
      %1084 = vmatpush1.bf16.msra.mxu0 %v1056
      %1085 = vmatprep.subr.bf16.mxu0 %v1059
      %1086 = vmatpush1.bf16.msra.mxu0 %v1058
      %1087 = vmatprep.subr.bf16.mxu0 %v1061
      %1088 = vmatpush1.bf16.msra.mxu0 %v1060
      %1089 = vmatprep.subr.bf16.mxu0 %v1063
      %1090 = vmatpush1.bf16.msra.mxu0 %v1062
      %1091 = vmatprep.subr.bf16.mxu0 %v1065
      %1092 = vmatpush1.bf16.msra.mxu0 %v1064
      %1093 = vmatprep.subr.bf16.mxu0 %v1067
      %1094 = vmatpush1.bf16.msra.mxu0 %v1066
      %1095 = vmatprep.subr.bf16.mxu0 0
      %1096 = vmatpush1.bf16.msra.mxu0 0
      %1097 = vmatprep.subr.bf16.mxu0 0
      %1098 = vmatpush1.bf16.msra.mxu0 0
      %1099 = vmatprep.subr.bf16.mxu0 0
      %1100 = vmatpush1.bf16.msra.mxu0 0
      %1101 = vmatprep.subr.bf16.mxu0 0
      %1102 = vmatpush1.bf16.msra.mxu0 0
      %1103 = vmatprep.subr.bf16.mxu0 0
      %1104 = vmatpush1.bf16.msra.mxu0 0
      %1105 = vmatprep.subr.bf16.mxu0 0
      %1106 = vmatpush1.bf16.msra.mxu0 0
      %1107 = vmatprep.subr.bf16.mxu0 0
      %1108 = vmatpush1.bf16.msra.mxu0 0
      %1109 = vmatprep.mubr.bf16.mxu0 %v1075
      %1110 = vmatmul.mubr.bf16.gmra.mrb[0].mxu0 %v1071
      %v1111 = vpop.f32.mrb[0].mxu0
      %v1112 = vadd.f32 0.0, %v1111
      %v1113 = vpop.f32.mrb[0].mxu0
      %v1114 = vadd.f32 0.0, %v1113
      %v1115 = vpop.f32.mrb[0].mxu0
      %v1116 = vpop.f32.mrb[0].mxu0
      %1117 = vdwg.mxu0
      %v1118 = vld [vmem:[%s6] sm:$0xff]
      %1120 = vset.pattern.permute.xlu0 0
      %1121 = vperm.xlu0 %1120, %v1118
      %v1122 = vpop.permute.xlu0 %1121
      %v1124 = vmul.f32 %v1112, %v1122
      %v1125 = vmul.f32 %v1114, %v1122
      %v1126 = vld [vmem:[%s7] sm:$0xff]
      %1128 = vset.pattern.permute.xlu0 0
      %1129 = vperm.xlu0 %1128, %v1126
      %v1130 = vpop.permute.xlu0 %1129
      %v1132 = vadd.f32 %v1124, %v1130
      %v1133 = vadd.f32 %v1125, %v1130
      %vm1134 = vcmp.gt.f32.partialorder %v1132, 0.0
      %vm1135 = vcmp.gt.f32.partialorder %v1133, 0.0
      %v1136 = vmul.f32 %v1132, 0.1
      %v1137 = vmul.f32 %v1133, 0.1
      %v1138 = vsel %vm1134, %v1132, %v1136
      %v1139 = vsel %vm1135, %v1133, %v1137
      %1140 = vst [vmem:[%s352] sm:$0xff] %v1138
      %1141 = vst [vmem:[%s352 + $0x8] sm:$0xff] %v1139
      %p1142 = scmp.lt.s32.totalorder %s20, 1
      %s1143 = scalar_select %p1142, %s20, 1
      %s1144 = smul.addr %s1143, 2
      %s1145 = smul.addr %s1144, 8
      %s1146 = scalar_lea.vmem %s9, %s1145
      // Predicated region
      $region57: #{up_transition_forward.1} parent=55 // pred_check
        %p1147 = pneg %p237
      $region58: #{up_transition_forward.1} parent=55 // pred_check_branch
        %1149 = sbr.rel (%p1147) target = $region60
      $region59: #{up_transition_forward.1} parent=55 // pred_region
        _
      $region60: #{up_transition_forward.1} parent=55 // pred_fallthru
        _
    $region56: #{up_transition_forward.1} parent=5 // pred_fallthru
      _
    %p1150 = scmp.le.s32.totalorder 2, %s15
    // Predicated region
    $region61: #{up_transition_forward.1} parent=5 // pred_check
      %p1151 = pneg %p1150
    $region62: #{up_transition_forward.1} parent=5 // pred_check_branch
      %1153 = sbr.rel (%p1151) target = $region64
    $region63: #{up_transition_forward.1} parent=5 // pred_region
      %s1154 = ssub.s32 %s15, 2
      // Predicated region
      $region65: #{up_transition_forward.1} parent=63 // pred_check
        %p1155 = pneg %p243
      $region66: #{up_transition_forward.1} parent=63 // pred_check_branch
        %1157 = sbr.rel (%p1155) target = $region68
      $region67: #{up_transition_forward.1} parent=63 // pred_region
        %p1158 = scmp.lt.s32.totalorder %s21, 1
        %s1159 = scalar_select %p1158, %s21, 1
        %s1160 = smul.addr %s1159, 2
        %s1161 = smul.addr %s1160, 8
        %s1162 = scalar_lea.vmem %s9, %s1161
      $region68: #{up_transition_forward.1} parent=63 // pred_fallthru
        _
    $region64: #{up_transition_forward.1} parent=5 // pred_fallthru
      _
  $region6: #{up_transition_forward.1} parent=0 // loop_footer
    %s19 = sadd.s32 1, %s15
  $region7: #{up_transition_forward.1} parent=0 // loop_footer_branch
    %14 = sbr.rel target = $region3
  $region8: #{up_transition_forward.1} parent=0 // loop_exit
    _

</llo_original>
